<compile_context>
chip_gen: v7x
topology: tpu7x:2x2x1
jax: 0.10.0
libtpu: 0.0.40
codegen_flags: <defaults>
</compile_context>

<pallas_src>
import math
import jax
import jax.numpy as jnp
from jax.experimental import pallas as pl
from jax.experimental.pallas import tpu as pltpu


def attention_classifier_forward(input_ids, params, num_heads):
    """input_ids: [B, S] int32 token ids. Returns [B] sigmoid scores."""
    B, S = input_ids.shape
    V, E = params["tok_emb"].shape
    P = params["pos_emb"].shape[0]
    I = params["w1"].shape[1]
    H = num_heads
    D = E // H
    inv_sqrt_d = 1.0 / math.sqrt(D)

    def kernel(ids_ref, tok_ref, pos_ref, g_ref, beta_ref,
               wqkv_ref, bqkv_ref, wo_ref, bo_ref,
               w1_ref, b1_ref, w2_ref, b2_ref, out_ref):
        # ---------- Embeddings: token lookup (one-hot @ table) + positional + LayerNorm
        ids = ids_ref[0]                                                   # (S, 1) int32
        one_hot = (jax.lax.broadcasted_iota(jnp.int32, (S, V), 1) == ids
                   ).astype(jnp.float32)                                   # (S, V)
        x = jnp.dot(one_hot, tok_ref[...], preferred_element_type=jnp.float32)
        x = x + pos_ref[0:S, :]                                            # (S, E)
        mean = jnp.mean(x, axis=-1, keepdims=True)
        xc = x - mean
        var = jnp.mean(xc * xc, axis=-1, keepdims=True)
        x = xc * jax.lax.rsqrt(var + 1e-5) * g_ref[...] + beta_ref[...]
        # Embeddings dropout: inference mode -> identity.

        # ---------- Multi-head attention: fused QKV projection (one matmul)
        qkv = jnp.dot(x, wqkv_ref[...],
                      preferred_element_type=jnp.float32) + bqkv_ref[...]  # (S, 3E)
        # Only the CLS-token (row 0) query is ever consumed downstream.
        q_cls = qkv[0:1, 0:E] * inv_sqrt_d       # (1, E); 1/sqrt(D) folded into q
        k_all = qkv[:, E:2 * E]                  # (S, E)
        v_all = qkv[:, 2 * E:3 * E]              # (S, E)

        # Per-head column masks; each head accumulates its stripe directly into the
        # lane-dense concatenated (1, E) layout (no per-head D-lane stores).
        col = jax.lax.broadcasted_iota(jnp.int32, (1, E), 1)
        attn_cls = jnp.zeros((1, E), jnp.float32)
        for h in range(H):
            m_h = jnp.logical_and(col >= h * D, col < (h + 1) * D).astype(jnp.float32)
            scores = jax.lax.dot_general(                                  # q_h @ k_h^T
                q_cls * m_h, k_all, (((1,), (1,)), ((), ())),
                preferred_element_type=jnp.float32)                        # (1, S)
            s_max = jnp.max(scores, axis=-1, keepdims=True)
            p = jnp.exp(scores - s_max)
            p = p * pl.reciprocal(jnp.sum(p, axis=-1, keepdims=True), approx=True)
            attn_cls = attn_cls + jnp.dot(p, v_all * m_h,
                                          preferred_element_type=jnp.float32)
        cls = jnp.dot(attn_cls, wo_ref[...],
                      preferred_element_type=jnp.float32) + bo_ref[...]    # (1, E)

        # ---------- CLS token -> FNN classifier head
        h1 = jnp.dot(cls, w1_ref[...],
                     preferred_element_type=jnp.float32) + b1_ref[...]     # (1, I)
        # TODO(synk): torch.nn.GELU() defaults to exact erf; tanh approximation used here.
        c0 = math.sqrt(2.0 / math.pi)
        h1 = 0.5 * h1 * (1.0 + jnp.tanh(c0 * (h1 + 0.044715 * (h1 * h1 * h1))))
        # FNN dropout: inference mode -> identity.
        logit = jnp.sum(h1 * w2_ref[...], axis=-1, keepdims=True) + b2_ref[...]  # (1, 1)
        out_ref[0] = 1.0 / (1.0 + jnp.exp(-logit))

    out = pl.pallas_call(
        kernel,
        out_shape=jax.ShapeDtypeStruct((B, 1, 1), jnp.float32),
        grid_spec=pltpu.PrefetchScalarGridSpec(
            num_scalar_prefetch=0,
            grid=(B,),
            in_specs=[
                pl.BlockSpec((1, S, 1), lambda b: (b, 0, 0)),   # token ids
                pl.BlockSpec((V, E), lambda b: (0, 0)),         # token embedding table
                pl.BlockSpec((P, E), lambda b: (0, 0)),         # positional embedding table
                pl.BlockSpec((1, E), lambda b: (0, 0)),         # layernorm gamma
                pl.BlockSpec((1, E), lambda b: (0, 0)),         # layernorm beta
                pl.BlockSpec((E, 3 * E), lambda b: (0, 0)),     # fused Wqkv
                pl.BlockSpec((1, 3 * E), lambda b: (0, 0)),     # fused bqkv
                pl.BlockSpec((E, E), lambda b: (0, 0)),         # Wo
                pl.BlockSpec((1, E), lambda b: (0, 0)),         # bo
                pl.BlockSpec((E, I), lambda b: (0, 0)),         # FNN W1
                pl.BlockSpec((1, I), lambda b: (0, 0)),         # FNN b1
                pl.BlockSpec((1, I), lambda b: (0, 0)),         # FNN W2 (stored as a row)
                pl.BlockSpec((1, 1), lambda b: (0, 0)),         # FNN b2
            ],
            out_specs=pl.BlockSpec((1, 1, 1), lambda b: (b, 0, 0)),
        ),
        compiler_params=pltpu.CompilerParams(
            dimension_semantics=("parallel",)),
    )(input_ids.astype(jnp.int32)[..., None],
      params["tok_emb"], params["pos_emb"], params["ln_gamma"], params["ln_beta"],
      params["wqkv"], params["bqkv"], params["wo"], params["bo"],
      params["w1"], params["b1"], params["w2"], params["b2"])
    return out[:, 0, 0]


def init_params(key, vocab, max_pos, embed, num_heads, inter):
    ks = jax.random.split(key, 10)
    b_e = 1.0 / math.sqrt(embed)     # torch Linear default bound (fan_in = embed)
    b_i = 1.0 / math.sqrt(inter)     # fan_in = inter for the final Linear

    def u(k, shape, bound):
        return jax.random.uniform(k, shape, jnp.float32, -bound, bound)

    return {
        "tok_emb": jax.random.normal(ks[0], (vocab, embed), jnp.float32),
        "pos_emb": jax.random.normal(ks[1], (max_pos, embed), jnp.float32),
        "ln_gamma": jnp.ones((1, embed), jnp.float32),
        "ln_beta": jnp.zeros((1, embed), jnp.float32),
        "wqkv": u(ks[2], (embed, 3 * embed), b_e),   # [Wq_h0..Wq_hN | Wk_* | Wv_*] columns
        "bqkv": u(ks[3], (1, 3 * embed), b_e),
        "wo": u(ks[4], (embed, embed), b_e),
        "bo": u(ks[5], (1, embed), b_e),
        "w1": u(ks[6], (embed, inter), b_e),
        "b1": u(ks[7], (1, inter), b_e),
        "w2": u(ks[8], (1, inter), b_i),             # Linear(inter, 1) stored as a row
        "b2": u(ks[9], (1, 1), b_i),
    }


def reference(input_ids, params, num_heads):
    """Pure-JAX reference mirroring the PyTorch AttentionClassifier forward (eval mode)."""
    B, S = input_ids.shape
    V, E = params["tok_emb"].shape
    D = E // num_heads
    x = params["tok_emb"][input_ids] + params["pos_emb"][:S][None, :, :]
    mean = x.mean(-1, keepdims=True)
    var = ((x - mean) ** 2).mean(-1, keepdims=True)
    x = (x - mean) / jnp.sqrt(var + 1e-5) * params["ln_gamma"] + params["ln_beta"]
    qkv = x @ params["wqkv"] + params["bqkv"]
    q, k, v = qkv[..., :E], qkv[..., E:2 * E], qkv[..., 2 * E:]
    heads = []
    for h in range(num_heads):
        qh = q[..., h * D:(h + 1) * D]
        kh = k[..., h * D:(h + 1) * D]
        vh = v[..., h * D:(h + 1) * D]
        s = jnp.einsum("bqd,bkd->bqk", qh, kh) / math.sqrt(D)
        w = jax.nn.softmax(s, axis=-1)
        heads.append(jnp.einsum("bqk,bkd->bqd", w, vh))
    attn = jnp.concatenate(heads, axis=-1) @ params["wo"] + params["bo"]
    cls = attn[:, 0, :]
    h1 = cls @ params["w1"] + params["b1"]
    c0 = math.sqrt(2.0 / math.pi)
    h1 = 0.5 * h1 * (1.0 + jnp.tanh(c0 * (h1 + 0.044715 * h1 ** 3)))
    logit = jnp.sum(h1 * params["w2"], axis=-1, keepdims=True) + params["b2"]
    return jax.nn.sigmoid(logit)[:, 0]


if __name__ == "__main__":
    # batch=2, seq=8, vocab=100, max_pos=16, hidden=32, heads=4, intermediate=64
    B, S = 2, 8
    VOCAB, MAX_POS, E, H, INTER = 100, 16, 32, 4, 64

    key = jax.random.PRNGKey(0)
    k_ids, k_p = jax.random.split(key)
    input_ids = jax.random.randint(k_ids, (B, S), 0, VOCAB, dtype=jnp.int32)
    params = init_params(k_p, VOCAB, MAX_POS, E, H, INTER)

    out = attention_classifier_forward(input_ids, params, H)
    out = jax.block_until_ready(out)

    ref = reference(input_ids, params, H)
    assert out.shape == (B,)
    assert jnp.allclose(out, ref, atol=2e-3, rtol=2e-3), (out, ref)

    print("KERNEL_OK")
</pallas_src>

<mosaic_0001>
module attributes {stable_mosaic.version = 11 : i64} {
  func.func @kernel(%arg0: i32, %arg1: memref<1x8x1xi32, #tpu.memory_space<vmem>>, %arg2: memref<100x32xf32, #tpu.memory_space<vmem>>, %arg3: memref<16x32xf32, #tpu.memory_space<vmem>>, %arg4: memref<1x32xf32, #tpu.memory_space<vmem>>, %arg5: memref<1x32xf32, #tpu.memory_space<vmem>>, %arg6: memref<32x96xf32, #tpu.memory_space<vmem>>, %arg7: memref<1x96xf32, #tpu.memory_space<vmem>>, %arg8: memref<32x32xf32, #tpu.memory_space<vmem>>, %arg9: memref<1x32xf32, #tpu.memory_space<vmem>>, %arg10: memref<32x64xf32, #tpu.memory_space<vmem>>, %arg11: memref<1x64xf32, #tpu.memory_space<vmem>>, %arg12: memref<1x64xf32, #tpu.memory_space<vmem>>, %arg13: memref<1x1xf32, #tpu.memory_space<vmem>>, %arg14: memref<1x1x1xf32, #tpu.memory_space<vmem>>) attributes {dimension_semantics = [#tpu.dimension_semantics<parallel>], iteration_bounds = array<i64: 2>, scalar_prefetch = 0 : i64, scratch_operands = 0 : i64, tpu.core_type = #tpu.core_type<tc>, window_params = [{transform_indices = @transform_0, window_bounds = array<i64: 1, 8, 1>}, {pipeline_mode = #tpu.pipeline_mode<synchronous>, transform_indices = @transform_1, window_bounds = array<i64: 100, 32>}, {pipeline_mode = #tpu.pipeline_mode<synchronous>, transform_indices = @transform_2, window_bounds = array<i64: 16, 32>}, {pipeline_mode = #tpu.pipeline_mode<synchronous>, transform_indices = @transform_3, window_bounds = array<i64: 1, 32>}, {pipeline_mode = #tpu.pipeline_mode<synchronous>, transform_indices = @transform_4, window_bounds = array<i64: 1, 32>}, {pipeline_mode = #tpu.pipeline_mode<synchronous>, transform_indices = @transform_5, window_bounds = array<i64: 32, 96>}, {pipeline_mode = #tpu.pipeline_mode<synchronous>, transform_indices = @transform_6, window_bounds = array<i64: 1, 96>}, {pipeline_mode = #tpu.pipeline_mode<synchronous>, transform_indices = @transform_7, window_bounds = array<i64: 32, 32>}, {pipeline_mode = #tpu.pipeline_mode<synchronous>, transform_indices = @transform_8, window_bounds = array<i64: 1, 32>}, {pipeline_mode = #tpu.pipeline_mode<synchronous>, transform_indices = @transform_9, window_bounds = array<i64: 32, 64>}, {pipeline_mode = #tpu.pipeline_mode<synchronous>, transform_indices = @transform_10, window_bounds = array<i64: 1, 64>}, {pipeline_mode = #tpu.pipeline_mode<synchronous>, transform_indices = @transform_11, window_bounds = array<i64: 1, 64>}, {pipeline_mode = #tpu.pipeline_mode<synchronous>, transform_indices = @transform_12, window_bounds = array<i64: 1, 1>}, {transform_indices = @transform_13, window_bounds = array<i64: 1, 1, 1>}]} {
    %c0 = arith.constant 0 : index
    %c0_0 = arith.constant 0 : index
    %c0_1 = arith.constant 0 : index
    %0 = vector.load %arg1[%c0, %c0_0, %c0_1] : memref<1x8x1xi32, #tpu.memory_space<vmem>>, vector<1x8x1xi32>
    %1 = vector.shape_cast %0 : vector<1x8x1xi32> to vector<8x1xi32>
    %2 = tpu.iota {dimensions = array<i32: 1>} : vector<8x100xi32>
    %3 = vector.broadcast %1 : vector<8x1xi32> to vector<8x100xi32>
    %4 = arith.cmpi eq, %2, %3 : vector<8x100xi32>
    %5 = arith.extui %4 : vector<8x100xi1> to vector<8x100xi32>
    %6 = arith.sitofp %5 : vector<8x100xi32> to vector<8x100xf32>
    %c0_2 = arith.constant 0 : index
    %c0_3 = arith.constant 0 : index
    %7 = vector.load %arg2[%c0_2, %c0_3] : memref<100x32xf32, #tpu.memory_space<vmem>>, vector<100x32xf32>
    %cst = arith.constant dense<0.000000e+00> : vector<8x32xf32>
    %8 = tpu.matmul %6, %7, %cst {dimension_numbers = #tpu.dot_dimension_numbers<[1], [0], [0], [1], [0, 0, 1, 1], [], []>} : vector<8x100xf32>, vector<100x32xf32>, vector<8x32xf32> -> vector<8x32xf32>
    %c0_4 = arith.constant 0 : index
    %c0_5 = arith.constant 0 : index
    %9 = vector.load %arg3[%c0_4, %c0_5] : memref<16x32xf32, #tpu.memory_space<vmem>>, vector<8x32xf32>
    %10 = arith.addf %8, %9 : vector<8x32xf32>
    %cst_6 = arith.constant dense<0.000000e+00> : vector<8xf32>
    %11 = vector.multi_reduction <add>, %10, %cst_6 [1] : vector<8x32xf32> to vector<8xf32>
    %12 = vector.shape_cast %11 : vector<8xf32> to vector<8x1xf32>
    %cst_7 = arith.constant 3.200000e+01 : f32
    %13 = vector.broadcast %cst_7 : f32 to vector<8x1xf32>
    %14 = arith.divf %12, %13 : vector<8x1xf32>
    %15 = vector.broadcast %14 : vector<8x1xf32> to vector<8x32xf32>
    %16 = arith.subf %10, %15 : vector<8x32xf32>
    %17 = arith.mulf %16, %16 : vector<8x32xf32>
    %cst_8 = arith.constant dense<0.000000e+00> : vector<8xf32>
    %18 = vector.multi_reduction <add>, %17, %cst_8 [1] : vector<8x32xf32> to vector<8xf32>
    %19 = vector.shape_cast %18 : vector<8xf32> to vector<8x1xf32>
    %cst_9 = arith.constant 3.200000e+01 : f32
    %20 = vector.broadcast %cst_9 : f32 to vector<8x1xf32>
    %21 = arith.divf %19, %20 : vector<8x1xf32>
    %cst_10 = arith.constant 9.99999974E-6 : f32
    %22 = vector.broadcast %cst_10 : f32 to vector<8x1xf32>
    %23 = arith.addf %21, %22 : vector<8x1xf32>
    %24 = math.rsqrt %23 : vector<8x1xf32>
    %25 = vector.broadcast %24 : vector<8x1xf32> to vector<8x32xf32>
    %26 = arith.mulf %16, %25 : vector<8x32xf32>
    %c0_11 = arith.constant 0 : index
    %c0_12 = arith.constant 0 : index
    %27 = vector.load %arg4[%c0_11, %c0_12] : memref<1x32xf32, #tpu.memory_space<vmem>>, vector<1x32xf32>
    %28 = vector.broadcast %27 : vector<1x32xf32> to vector<8x32xf32>
    %29 = arith.mulf %26, %28 : vector<8x32xf32>
    %c0_13 = arith.constant 0 : index
    %c0_14 = arith.constant 0 : index
    %30 = vector.load %arg5[%c0_13, %c0_14] : memref<1x32xf32, #tpu.memory_space<vmem>>, vector<1x32xf32>
    %31 = vector.broadcast %30 : vector<1x32xf32> to vector<8x32xf32>
    %32 = arith.addf %29, %31 : vector<8x32xf32>
    %c0_15 = arith.constant 0 : index
    %c0_16 = arith.constant 0 : index
    %33 = vector.load %arg6[%c0_15, %c0_16] : memref<32x96xf32, #tpu.memory_space<vmem>>, vector<32x96xf32>
    %cst_17 = arith.constant dense<0.000000e+00> : vector<8x96xf32>
    %34 = tpu.matmul %32, %33, %cst_17 {dimension_numbers = #tpu.dot_dimension_numbers<[1], [0], [0], [1], [0, 0, 1, 1], [], []>} : vector<8x32xf32>, vector<32x96xf32>, vector<8x96xf32> -> vector<8x96xf32>
    %c0_18 = arith.constant 0 : index
    %c0_19 = arith.constant 0 : index
    %35 = vector.load %arg7[%c0_18, %c0_19] : memref<1x96xf32, #tpu.memory_space<vmem>>, vector<1x96xf32>
    %36 = vector.broadcast %35 : vector<1x96xf32> to vector<8x96xf32>
    %37 = arith.addf %34, %36 : vector<8x96xf32>
    %38 = vector.extract_strided_slice %37 {offsets = [0, 0], sizes = [1, 32], strides = [1, 1]} : vector<8x96xf32> to vector<1x32xf32>
    %cst_20 = arith.constant 0.353553385 : f32
    %39 = vector.broadcast %cst_20 : f32 to vector<1x32xf32>
    %40 = arith.mulf %38, %39 : vector<1x32xf32>
    %41 = vector.extract_strided_slice %37 {offsets = [0, 32], sizes = [8, 32], strides = [1, 1]} : vector<8x96xf32> to vector<8x32xf32>
    %42 = vector.extract_strided_slice %37 {offsets = [0, 64], sizes = [8, 32], strides = [1, 1]} : vector<8x96xf32> to vector<8x32xf32>
    %43 = tpu.iota {dimensions = array<i32: 1>} : vector<1x32xi32>
    %cst_21 = arith.constant 0.000000e+00 : f32
    %44 = vector.broadcast %cst_21 : f32 to vector<1x32xf32>
    %c0_i32 = arith.constant 0 : i32
    %45 = vector.broadcast %c0_i32 : i32 to vector<1x32xi32>
    %46 = arith.cmpi sge, %43, %45 : vector<1x32xi32>
    %c8_i32 = arith.constant 8 : i32
    %47 = vector.broadcast %c8_i32 : i32 to vector<1x32xi32>
    %48 = arith.cmpi slt, %43, %47 : vector<1x32xi32>
    %49 = arith.andi %46, %48 : vector<1x32xi1>
    %50 = arith.extui %49 : vector<1x32xi1> to vector<1x32xi32>
    %51 = arith.sitofp %50 : vector<1x32xi32> to vector<1x32xf32>
    %52 = arith.mulf %40, %51 : vector<1x32xf32>
    %cst_22 = arith.constant dense<0.000000e+00> : vector<1x8xf32>
    %53 = tpu.matmul %52, %41, %cst_22 {dimension_numbers = #tpu.dot_dimension_numbers<[1], [1], [0], [0], [0, 0, 1, 0], [], []>} : vector<1x32xf32>, vector<8x32xf32>, vector<1x8xf32> -> vector<1x8xf32>
    %cst_23 = arith.constant dense<0xFF800000> : vector<1xf32>
    %54 = vector.multi_reduction <maximumf>, %53, %cst_23 [1] : vector<1x8xf32> to vector<1xf32>
    %55 = vector.shape_cast %54 : vector<1xf32> to vector<1x1xf32>
    %56 = vector.broadcast %55 : vector<1x1xf32> to vector<1x8xf32>
    %57 = arith.subf %53, %56 : vector<1x8xf32>
    %58 = math.exp %57 : vector<1x8xf32>
    %cst_24 = arith.constant dense<0.000000e+00> : vector<1xf32>
    %59 = vector.multi_reduction <add>, %58, %cst_24 [1] : vector<1x8xf32> to vector<1xf32>
    %60 = vector.shape_cast %59 : vector<1xf32> to vector<1x1xf32>
    %61 = tpu.reciprocal %60 {approx = true} : vector<1x1xf32> -> vector<1x1xf32>
    %62 = vector.broadcast %61 : vector<1x1xf32> to vector<1x8xf32>
    %63 = arith.mulf %58, %62 : vector<1x8xf32>
    %64 = vector.broadcast %51 : vector<1x32xf32> to vector<8x32xf32>
    %65 = arith.mulf %42, %64 : vector<8x32xf32>
    %cst_25 = arith.constant dense<0.000000e+00> : vector<1x32xf32>
    %66 = tpu.matmul %63, %65, %cst_25 {dimension_numbers = #tpu.dot_dimension_numbers<[1], [0], [0], [1], [0, 0, 1, 1], [], []>} : vector<1x8xf32>, vector<8x32xf32>, vector<1x32xf32> -> vector<1x32xf32>
    %67 = arith.addf %44, %66 : vector<1x32xf32>
    %c8_i32_26 = arith.constant 8 : i32
    %68 = vector.broadcast %c8_i32_26 : i32 to vector<1x32xi32>
    %69 = arith.cmpi sge, %43, %68 : vector<1x32xi32>
    %c16_i32 = arith.constant 16 : i32
    %70 = vector.broadcast %c16_i32 : i32 to vector<1x32xi32>
    %71 = arith.cmpi slt, %43, %70 : vector<1x32xi32>
    %72 = arith.andi %69, %71 : vector<1x32xi1>
    %73 = arith.extui %72 : vector<1x32xi1> to vector<1x32xi32>
    %74 = arith.sitofp %73 : vector<1x32xi32> to vector<1x32xf32>
    %75 = arith.mulf %40, %74 : vector<1x32xf32>
    %cst_27 = arith.constant dense<0.000000e+00> : vector<1x8xf32>
    %76 = tpu.matmul %75, %41, %cst_27 {dimension_numbers = #tpu.dot_dimension_numbers<[1], [1], [0], [0], [0, 0, 1, 0], [], []>} : vector<1x32xf32>, vector<8x32xf32>, vector<1x8xf32> -> vector<1x8xf32>
    %cst_28 = arith.constant dense<0xFF800000> : vector<1xf32>
    %77 = vector.multi_reduction <maximumf>, %76, %cst_28 [1] : vector<1x8xf32> to vector<1xf32>
    %78 = vector.shape_cast %77 : vector<1xf32> to vector<1x1xf32>
    %79 = vector.broadcast %78 : vector<1x1xf32> to vector<1x8xf32>
    %80 = arith.subf %76, %79 : vector<1x8xf32>
    %81 = math.exp %80 : vector<1x8xf32>
    %cst_29 = arith.constant dense<0.000000e+00> : vector<1xf32>
    %82 = vector.multi_reduction <add>, %81, %cst_29 [1] : vector<1x8xf32> to vector<1xf32>
    %83 = vector.shape_cast %82 : vector<1xf32> to vector<1x1xf32>
    %84 = tpu.reciprocal %83 {approx = true} : vector<1x1xf32> -> vector<1x1xf32>
    %85 = vector.broadcast %84 : vector<1x1xf32> to vector<1x8xf32>
    %86 = arith.mulf %81, %85 : vector<1x8xf32>
    %87 = vector.broadcast %74 : vector<1x32xf32> to vector<8x32xf32>
    %88 = arith.mulf %42, %87 : vector<8x32xf32>
    %cst_30 = arith.constant dense<0.000000e+00> : vector<1x32xf32>
    %89 = tpu.matmul %86, %88, %cst_30 {dimension_numbers = #tpu.dot_dimension_numbers<[1], [0], [0], [1], [0, 0, 1, 1], [], []>} : vector<1x8xf32>, vector<8x32xf32>, vector<1x32xf32> -> vector<1x32xf32>
    %90 = arith.addf %67, %89 : vector<1x32xf32>
    %c16_i32_31 = arith.constant 16 : i32
    %91 = vector.broadcast %c16_i32_31 : i32 to vector<1x32xi32>
    %92 = arith.cmpi sge, %43, %91 : vector<1x32xi32>
    %c24_i32 = arith.constant 24 : i32
    %93 = vector.broadcast %c24_i32 : i32 to vector<1x32xi32>
    %94 = arith.cmpi slt, %43, %93 : vector<1x32xi32>
    %95 = arith.andi %92, %94 : vector<1x32xi1>
    %96 = arith.extui %95 : vector<1x32xi1> to vector<1x32xi32>
    %97 = arith.sitofp %96 : vector<1x32xi32> to vector<1x32xf32>
    %98 = arith.mulf %40, %97 : vector<1x32xf32>
    %cst_32 = arith.constant dense<0.000000e+00> : vector<1x8xf32>
    %99 = tpu.matmul %98, %41, %cst_32 {dimension_numbers = #tpu.dot_dimension_numbers<[1], [1], [0], [0], [0, 0, 1, 0], [], []>} : vector<1x32xf32>, vector<8x32xf32>, vector<1x8xf32> -> vector<1x8xf32>
    %cst_33 = arith.constant dense<0xFF800000> : vector<1xf32>
    %100 = vector.multi_reduction <maximumf>, %99, %cst_33 [1] : vector<1x8xf32> to vector<1xf32>
    %101 = vector.shape_cast %100 : vector<1xf32> to vector<1x1xf32>
    %102 = vector.broadcast %101 : vector<1x1xf32> to vector<1x8xf32>
    %103 = arith.subf %99, %102 : vector<1x8xf32>
    %104 = math.exp %103 : vector<1x8xf32>
    %cst_34 = arith.constant dense<0.000000e+00> : vector<1xf32>
    %105 = vector.multi_reduction <add>, %104, %cst_34 [1] : vector<1x8xf32> to vector<1xf32>
    %106 = vector.shape_cast %105 : vector<1xf32> to vector<1x1xf32>
    %107 = tpu.reciprocal %106 {approx = true} : vector<1x1xf32> -> vector<1x1xf32>
    %108 = vector.broadcast %107 : vector<1x1xf32> to vector<1x8xf32>
    %109 = arith.mulf %104, %108 : vector<1x8xf32>
    %110 = vector.broadcast %97 : vector<1x32xf32> to vector<8x32xf32>
    %111 = arith.mulf %42, %110 : vector<8x32xf32>
    %cst_35 = arith.constant dense<0.000000e+00> : vector<1x32xf32>
    %112 = tpu.matmul %109, %111, %cst_35 {dimension_numbers = #tpu.dot_dimension_numbers<[1], [0], [0], [1], [0, 0, 1, 1], [], []>} : vector<1x8xf32>, vector<8x32xf32>, vector<1x32xf32> -> vector<1x32xf32>
    %113 = arith.addf %90, %112 : vector<1x32xf32>
    %c24_i32_36 = arith.constant 24 : i32
    %114 = vector.broadcast %c24_i32_36 : i32 to vector<1x32xi32>
    %115 = arith.cmpi sge, %43, %114 : vector<1x32xi32>
    %c32_i32 = arith.constant 32 : i32
    %116 = vector.broadcast %c32_i32 : i32 to vector<1x32xi32>
    %117 = arith.cmpi slt, %43, %116 : vector<1x32xi32>
    %118 = arith.andi %115, %117 : vector<1x32xi1>
    %119 = arith.extui %118 : vector<1x32xi1> to vector<1x32xi32>
    %120 = arith.sitofp %119 : vector<1x32xi32> to vector<1x32xf32>
    %121 = arith.mulf %40, %120 : vector<1x32xf32>
    %cst_37 = arith.constant dense<0.000000e+00> : vector<1x8xf32>
    %122 = tpu.matmul %121, %41, %cst_37 {dimension_numbers = #tpu.dot_dimension_numbers<[1], [1], [0], [0], [0, 0, 1, 0], [], []>} : vector<1x32xf32>, vector<8x32xf32>, vector<1x8xf32> -> vector<1x8xf32>
    %cst_38 = arith.constant dense<0xFF800000> : vector<1xf32>
    %123 = vector.multi_reduction <maximumf>, %122, %cst_38 [1] : vector<1x8xf32> to vector<1xf32>
    %124 = vector.shape_cast %123 : vector<1xf32> to vector<1x1xf32>
    %125 = vector.broadcast %124 : vector<1x1xf32> to vector<1x8xf32>
    %126 = arith.subf %122, %125 : vector<1x8xf32>
    %127 = math.exp %126 : vector<1x8xf32>
    %cst_39 = arith.constant dense<0.000000e+00> : vector<1xf32>
    %128 = vector.multi_reduction <add>, %127, %cst_39 [1] : vector<1x8xf32> to vector<1xf32>
    %129 = vector.shape_cast %128 : vector<1xf32> to vector<1x1xf32>
    %130 = tpu.reciprocal %129 {approx = true} : vector<1x1xf32> -> vector<1x1xf32>
    %131 = vector.broadcast %130 : vector<1x1xf32> to vector<1x8xf32>
    %132 = arith.mulf %127, %131 : vector<1x8xf32>
    %133 = vector.broadcast %120 : vector<1x32xf32> to vector<8x32xf32>
    %134 = arith.mulf %42, %133 : vector<8x32xf32>
    %cst_40 = arith.constant dense<0.000000e+00> : vector<1x32xf32>
    %135 = tpu.matmul %132, %134, %cst_40 {dimension_numbers = #tpu.dot_dimension_numbers<[1], [0], [0], [1], [0, 0, 1, 1], [], []>} : vector<1x8xf32>, vector<8x32xf32>, vector<1x32xf32> -> vector<1x32xf32>
    %136 = arith.addf %113, %135 : vector<1x32xf32>
    %c0_41 = arith.constant 0 : index
    %c0_42 = arith.constant 0 : index
    %137 = vector.load %arg8[%c0_41, %c0_42] : memref<32x32xf32, #tpu.memory_space<vmem>>, vector<32x32xf32>
    %cst_43 = arith.constant dense<0.000000e+00> : vector<1x32xf32>
    %138 = tpu.matmul %136, %137, %cst_43 {dimension_numbers = #tpu.dot_dimension_numbers<[1], [0], [0], [1], [0, 0, 1, 1], [], []>} : vector<1x32xf32>, vector<32x32xf32>, vector<1x32xf32> -> vector<1x32xf32>
    %c0_44 = arith.constant 0 : index
    %c0_45 = arith.constant 0 : index
    %139 = vector.load %arg9[%c0_44, %c0_45] : memref<1x32xf32, #tpu.memory_space<vmem>>, vector<1x32xf32>
    %140 = arith.addf %138, %139 : vector<1x32xf32>
    %c0_46 = arith.constant 0 : index
    %c0_47 = arith.constant 0 : index
    %141 = vector.load %arg10[%c0_46, %c0_47] : memref<32x64xf32, #tpu.memory_space<vmem>>, vector<32x64xf32>
    %cst_48 = arith.constant dense<0.000000e+00> : vector<1x64xf32>
    %142 = tpu.matmul %140, %141, %cst_48 {dimension_numbers = #tpu.dot_dimension_numbers<[1], [0], [0], [1], [0, 0, 1, 1], [], []>} : vector<1x32xf32>, vector<32x64xf32>, vector<1x64xf32> -> vector<1x64xf32>
    %c0_49 = arith.constant 0 : index
    %c0_50 = arith.constant 0 : index
    %143 = vector.load %arg11[%c0_49, %c0_50] : memref<1x64xf32, #tpu.memory_space<vmem>>, vector<1x64xf32>
    %144 = arith.addf %142, %143 : vector<1x64xf32>
    %cst_51 = arith.constant 5.000000e-01 : f32
    %145 = vector.broadcast %cst_51 : f32 to vector<1x64xf32>
    %146 = arith.mulf %145, %144 : vector<1x64xf32>
    %147 = arith.mulf %144, %144 : vector<1x64xf32>
    %148 = arith.mulf %147, %144 : vector<1x64xf32>
    %cst_52 = arith.constant 4.471500e-02 : f32
    %149 = vector.broadcast %cst_52 : f32 to vector<1x64xf32>
    %150 = arith.mulf %149, %148 : vector<1x64xf32>
    %151 = arith.addf %144, %150 : vector<1x64xf32>
    %cst_53 = arith.constant 0.797884583 : f32
    %152 = vector.broadcast %cst_53 : f32 to vector<1x64xf32>
    %153 = arith.mulf %152, %151 : vector<1x64xf32>
    %154 = math.tanh %153 : vector<1x64xf32>
    %cst_54 = arith.constant 1.000000e+00 : f32
    %155 = vector.broadcast %cst_54 : f32 to vector<1x64xf32>
    %156 = arith.addf %155, %154 : vector<1x64xf32>
    %157 = arith.mulf %146, %156 : vector<1x64xf32>
    %c0_55 = arith.constant 0 : index
    %c0_56 = arith.constant 0 : index
    %158 = vector.load %arg12[%c0_55, %c0_56] : memref<1x64xf32, #tpu.memory_space<vmem>>, vector<1x64xf32>
    %159 = arith.mulf %157, %158 : vector<1x64xf32>
    %cst_57 = arith.constant dense<0.000000e+00> : vector<1xf32>
    %160 = vector.multi_reduction <add>, %159, %cst_57 [1] : vector<1x64xf32> to vector<1xf32>
    %161 = vector.shape_cast %160 : vector<1xf32> to vector<1x1xf32>
    %c0_58 = arith.constant 0 : index
    %c0_59 = arith.constant 0 : index
    %162 = vector.load %arg13[%c0_58, %c0_59] : memref<1x1xf32, #tpu.memory_space<vmem>>, vector<1x1xf32>
    %163 = arith.addf %161, %162 : vector<1x1xf32>
    %cst_60 = arith.constant 0.000000e+00 : f32
    %164 = vector.broadcast %cst_60 : f32 to vector<1x1xf32>
    %165 = arith.subf %164, %163 : vector<1x1xf32>
    %166 = math.exp %165 : vector<1x1xf32>
    %cst_61 = arith.constant 1.000000e+00 : f32
    %167 = vector.broadcast %cst_61 : f32 to vector<1x1xf32>
    %168 = arith.addf %167, %166 : vector<1x1xf32>
    %cst_62 = arith.constant 1.000000e+00 : f32
    %169 = vector.broadcast %cst_62 : f32 to vector<1x1xf32>
    %170 = arith.divf %169, %168 : vector<1x1xf32>
    %c0_63 = arith.constant 0 : index
    %c0_64 = arith.constant 0 : index
    %c0_65 = arith.constant 0 : index
    %171 = vector.load %arg14[%c0_63, %c0_64, %c0_65] : memref<1x1x1xf32, #tpu.memory_space<vmem>>, vector<1x1x1xf32>
    %172 = vector.shape_cast %171 : vector<1x1x1xf32> to vector<1x1xf32>
    %173 = vector.shape_cast %170 : vector<1x1xf32> to vector<1x1x1xf32>
    tpu.vector_store %arg14[%c0_63, %c0_64, %c0_65], %173 {strides = array<i32>} : memref<1x1x1xf32, #tpu.memory_space<vmem>>, vector<1x1x1xf32>,
    return
  }
  func.func @transform_0(%arg0: i32) -> (i32, i32, i32) {
    %c0_i32 = arith.constant 0 : i32
    %c0_i32_0 = arith.constant 0 : i32
    %c0_i32_1 = arith.constant 0 : i32
    return %arg0, %c0_i32, %c0_i32_0 : i32, i32, i32
  }
  func.func @transform_1(%arg0: i32) -> (i32, i32) {
    %c0_i32 = arith.constant 0 : i32
    %c0_i32_0 = arith.constant 0 : i32
    %c0_i32_1 = arith.constant 0 : i32
    return %c0_i32, %c0_i32_0 : i32, i32
  }
  func.func @transform_2(%arg0: i32) -> (i32, i32) {
    %c0_i32 = arith.constant 0 : i32
    %c0_i32_0 = arith.constant 0 : i32
    %c0_i32_1 = arith.constant 0 : i32
    return %c0_i32, %c0_i32_0 : i32, i32
  }
  func.func @transform_3(%arg0: i32) -> (i32, i32) {
    %c0_i32 = arith.constant 0 : i32
    %c0_i32_0 = arith.constant 0 : i32
    %c0_i32_1 = arith.constant 0 : i32
    return %c0_i32, %c0_i32_0 : i32, i32
  }
  func.func @transform_4(%arg0: i32) -> (i32, i32) {
    %c0_i32 = arith.constant 0 : i32
    %c0_i32_0 = arith.constant 0 : i32
    %c0_i32_1 = arith.constant 0 : i32
    return %c0_i32, %c0_i32_0 : i32, i32
  }
  func.func @transform_5(%arg0: i32) -> (i32, i32) {
    %c0_i32 = arith.constant 0 : i32
    %c0_i32_0 = arith.constant 0 : i32
    %c0_i32_1 = arith.constant 0 : i32
    return %c0_i32, %c0_i32_0 : i32, i32
  }
  func.func @transform_6(%arg0: i32) -> (i32, i32) {
    %c0_i32 = arith.constant 0 : i32
    %c0_i32_0 = arith.constant 0 : i32
    %c0_i32_1 = arith.constant 0 : i32
    return %c0_i32, %c0_i32_0 : i32, i32
  }
  func.func @transform_7(%arg0: i32) -> (i32, i32) {
    %c0_i32 = arith.constant 0 : i32
    %c0_i32_0 = arith.constant 0 : i32
    %c0_i32_1 = arith.constant 0 : i32
    return %c0_i32, %c0_i32_0 : i32, i32
  }
  func.func @transform_8(%arg0: i32) -> (i32, i32) {
    %c0_i32 = arith.constant 0 : i32
    %c0_i32_0 = arith.constant 0 : i32
    %c0_i32_1 = arith.constant 0 : i32
    return %c0_i32, %c0_i32_0 : i32, i32
  }
  func.func @transform_9(%arg0: i32) -> (i32, i32) {
    %c0_i32 = arith.constant 0 : i32
    %c0_i32_0 = arith.constant 0 : i32
    %c0_i32_1 = arith.constant 0 : i32
    return %c0_i32, %c0_i32_0 : i32, i32
  }
  func.func @transform_10(%arg0: i32) -> (i32, i32) {
    %c0_i32 = arith.constant 0 : i32
    %c0_i32_0 = arith.constant 0 : i32
    %c0_i32_1 = arith.constant 0 : i32
    return %c0_i32, %c0_i32_0 : i32, i32
  }
  func.func @transform_11(%arg0: i32) -> (i32, i32) {
    %c0_i32 = arith.constant 0 : i32
    %c0_i32_0 = arith.constant 0 : i32
    %c0_i32_1 = arith.constant 0 : i32
    return %c0_i32, %c0_i32_0 : i32, i32
  }
  func.func @transform_12(%arg0: i32) -> (i32, i32) {
    %c0_i32 = arith.constant 0 : i32
    %c0_i32_0 = arith.constant 0 : i32
    %c0_i32_1 = arith.constant 0 : i32
    return %c0_i32, %c0_i32_0 : i32, i32
  }
  func.func @transform_13(%arg0: i32) -> (i32, i32, i32) {
    %c0_i32 = arith.constant 0 : i32
    %c0_i32_0 = arith.constant 0 : i32
    %c0_i32_1 = arith.constant 0 : i32
    return %arg0, %c0_i32, %c0_i32_0 : i32, i32, i32
  }
}

</mosaic_0001>

<llo_original>
// kernel: tpu_custom_call.1
$region0: #{tpu_custom_call.1}
  #allocation0 [shape = 'u32[]', space=smem, size = 0x4, offset = 0x4, fixed_abs, tag = 'smem constant byte address 0x4 - core index']
  #allocation1 [shape = 'u32[144,128]{1,0:T(1,128)}', space=vmem, size = 0x12000, scoped, tag = 'internal scratch']
  #allocation2 [shape = 'f32[1,1]{1,0:T(1,128)S(1)}', space=vmem, size = 0x200, scoped, tag = 'scoped memory for tpu_custom_call.1']
  %s0 = inlined_call_operand.vmem [shape: s32[2,8,1], index: 0, kind: input, shape index: {}]
  %s1 = inlined_call_operand.vmem [shape: f32[100,32], index: 1, kind: input, shape index: {}]
  %s2 = inlined_call_operand.vmem [shape: f32[16,32], index: 2, kind: input, shape index: {}]
  %s3 = inlined_call_operand.vmem [shape: f32[1,32], index: 3, kind: input, shape index: {}]
  %s4 = inlined_call_operand.vmem [shape: f32[1,32], index: 4, kind: input, shape index: {}]
  %s5 = inlined_call_operand.vmem [shape: f32[32,96], index: 5, kind: input, shape index: {}]
  %s6 = inlined_call_operand.vmem [shape: f32[1,96], index: 6, kind: input, shape index: {}]
  %s7 = inlined_call_operand.vmem [shape: f32[32,32], index: 7, kind: input, shape index: {}]
  %s8 = inlined_call_operand.vmem [shape: f32[1,32], index: 8, kind: input, shape index: {}]
  %s9 = inlined_call_operand.vmem [shape: f32[32,64], index: 9, kind: input, shape index: {}]
  %s10 = inlined_call_operand.vmem [shape: f32[1,64], index: 10, kind: input, shape index: {}]
  %s11 = inlined_call_operand.vmem [shape: f32[1,64], index: 11, kind: input, shape index: {}]
  %s12 = inlined_call_operand.<no memory space> [shape: f32[1,1], index: 12, kind: input, shape index: {}]
  %s13 = inlined_call_operand.vmem [shape: f32[2,1,1], index: 13, kind: output, shape index: {}]
  %s14 = sld [smem:[#allocation0]]
  $region85: #{tpu_custom_call.1} parent=0
    _
  %s16 = ssub.s32 1, %s14
  %s17 = scalar_select 0, %s16, %s14
  %v18 = vstv %s12
  %19 = vst [vmem:[#allocation2] sm:$0x1] %v18
  loop: start=0, step=1, limit=4
  $region2: #{tpu_custom_call.1} parent=0 // loop_pre_header
    _
  $region3: #{tpu_custom_call.1} parent=0 // loop_header
    %s21 = sphi 0, %s25
    %p22 = scmp.ge.s32.totalorder %s21, 4
    %s31 = sphi 0, %s33
    %s34 = sphi 0, %s31
    %s35 = sphi 0, %s34
    %s51 = sphi 0, %s35
    %s55 = sphi 0, %s55
    %s57 = sphi 0, %s55
    %s58 = sphi 0, %s57
    %s72 = sphi 0, %s58
    %s76 = sphi 0, %s76
    %s78 = sphi 0, %s76
    %s79 = sphi 0, %s78
    %s93 = sphi 0, %s79
    %s97 = sphi 0, %s97
    %s99 = sphi 0, %s97
    %s100 = sphi 0, %s99
    %s114 = sphi 0, %s100
    %s118 = sphi 0, %s118
    %s120 = sphi 0, %s118
    %s121 = sphi 0, %s120
    %s135 = sphi 0, %s121
    %s139 = sphi 0, %s139
    %s141 = sphi 0, %s139
    %s142 = sphi 0, %s141
    %s156 = sphi 0, %s142
    %s160 = sphi 0, %s160
    %s162 = sphi 0, %s160
    %s163 = sphi 0, %s162
    %s177 = sphi 0, %s163
    %s181 = sphi 0, %s181
    %s183 = sphi 0, %s181
    %s184 = sphi 0, %s183
    %s198 = sphi 0, %s184
    %s202 = sphi 0, %s202
    %s204 = sphi 0, %s202
    %s205 = sphi 0, %s204
    %s219 = sphi 0, %s205
    %s223 = sphi 0, %s223
    %s225 = sphi 0, %s223
    %s226 = sphi 0, %s225
    %s240 = sphi 0, %s226
    %s244 = sphi 0, %s244
    %s246 = sphi 0, %s244
    %s247 = sphi 0, %s246
    %s261 = sphi 0, %s247
    %s265 = sphi 0, %s265
    %s267 = sphi 0, %s265
    %s268 = sphi 0, %s267
    %s282 = sphi 0, %s268
    %s286 = sphi 0, %s286
    %s288 = sphi 0, %s286
    %s289 = sphi 0, %s288
    %s303 = sphi 0, %s289
    %s309 = sphi 0, %s311
    %s312 = sphi 0, %s309
    %s313 = sphi 0, %s312
    %s329 = sphi 0, %s313
  $region4: #{tpu_custom_call.1} parent=0 // loop_header_branch
    %24 = sbr.rel (%p22) target = $region8
  $region5: #{tpu_custom_call.1} parent=0 // loop_body
    %s26 = ssub.s32 %s21, 1
    %s27 = ssub.s32 %s21, 2
    %s28 = sadd.s32 %s21, 1
    %s29 = ssub.s32 %s21, %s28
    %p30 = scmp.eq.s32.totalorder %s29, 0
    %s32 = sadd.s32 %s31, 1
    %s33 = scalar_select %p30, %s31, %s32
    %p36 = pneg %p30
    %p37 = scmp.eq.s32.totalorder %s21, 1
    %p38 = por %p36, %p37
    %p39 = scmp.ne.s32.totalorder %s31, %s34
    %p40 = scmp.eq.s32.totalorder %s21, 0
    %p41 = por %p39, %p40
    %p42 = scmp.ne.s32.totalorder %s31, %s34
    %p43 = scmp.eq.s32.totalorder %s26, 1
    %p44 = por %p42, %p43
    %p45 = scmp.ne.s32.totalorder %s34, %s35
    %p46 = scmp.eq.s32.totalorder %s26, 0
    %p47 = por %p45, %p46
    %p48 = scmp.ne.s32.totalorder %s34, %s35
    %p49 = scmp.eq.s32.totalorder %s27, 1
    %p50 = por %p48, %p49
    %p52 = scmp.ne.s32.totalorder %s35, %s51
    %p53 = scmp.eq.s32.totalorder %s27, 0
    %p54 = por %p52, %p53
    %s56 = sadd.s32 %s55, 1
    %p59 = scmp.eq.s32.totalorder %s21, 1
    %p60 = scmp.ne.s32.totalorder %s55, %s57
    %p61 = scmp.eq.s32.totalorder %s21, 0
    %p62 = por %p60, %p61
    %p63 = scmp.ne.s32.totalorder %s55, %s57
    %p64 = scmp.eq.s32.totalorder %s26, 1
    %p65 = por %p63, %p64
    %p66 = scmp.ne.s32.totalorder %s57, %s58
    %p67 = scmp.eq.s32.totalorder %s26, 0
    %p68 = por %p66, %p67
    %p69 = scmp.ne.s32.totalorder %s57, %s58
    %p70 = scmp.eq.s32.totalorder %s27, 1
    %p71 = por %p69, %p70
    %p73 = scmp.ne.s32.totalorder %s58, %s72
    %p74 = scmp.eq.s32.totalorder %s27, 0
    %p75 = por %p73, %p74
    %s77 = sadd.s32 %s76, 1
    %p80 = scmp.eq.s32.totalorder %s21, 1
    %p81 = scmp.ne.s32.totalorder %s76, %s78
    %p82 = scmp.eq.s32.totalorder %s21, 0
    %p83 = por %p81, %p82
    %p84 = scmp.ne.s32.totalorder %s76, %s78
    %p85 = scmp.eq.s32.totalorder %s26, 1
    %p86 = por %p84, %p85
    %p87 = scmp.ne.s32.totalorder %s78, %s79
    %p88 = scmp.eq.s32.totalorder %s26, 0
    %p89 = por %p87, %p88
    %p90 = scmp.ne.s32.totalorder %s78, %s79
    %p91 = scmp.eq.s32.totalorder %s27, 1
    %p92 = por %p90, %p91
    %p94 = scmp.ne.s32.totalorder %s79, %s93
    %p95 = scmp.eq.s32.totalorder %s27, 0
    %p96 = por %p94, %p95
    %s98 = sadd.s32 %s97, 1
    %p101 = scmp.eq.s32.totalorder %s21, 1
    %p102 = scmp.ne.s32.totalorder %s97, %s99
    %p103 = scmp.eq.s32.totalorder %s21, 0
    %p104 = por %p102, %p103
    %p105 = scmp.ne.s32.totalorder %s97, %s99
    %p106 = scmp.eq.s32.totalorder %s26, 1
    %p107 = por %p105, %p106
    %p108 = scmp.ne.s32.totalorder %s99, %s100
    %p109 = scmp.eq.s32.totalorder %s26, 0
    %p110 = por %p108, %p109
    %p111 = scmp.ne.s32.totalorder %s99, %s100
    %p112 = scmp.eq.s32.totalorder %s27, 1
    %p113 = por %p111, %p112
    %p115 = scmp.ne.s32.totalorder %s100, %s114
    %p116 = scmp.eq.s32.totalorder %s27, 0
    %p117 = por %p115, %p116
    %s119 = sadd.s32 %s118, 1
    %p122 = scmp.eq.s32.totalorder %s21, 1
    %p123 = scmp.ne.s32.totalorder %s118, %s120
    %p124 = scmp.eq.s32.totalorder %s21, 0
    %p125 = por %p123, %p124
    %p126 = scmp.ne.s32.totalorder %s118, %s120
    %p127 = scmp.eq.s32.totalorder %s26, 1
    %p128 = por %p126, %p127
    %p129 = scmp.ne.s32.totalorder %s120, %s121
    %p130 = scmp.eq.s32.totalorder %s26, 0
    %p131 = por %p129, %p130
    %p132 = scmp.ne.s32.totalorder %s120, %s121
    %p133 = scmp.eq.s32.totalorder %s27, 1
    %p134 = por %p132, %p133
    %p136 = scmp.ne.s32.totalorder %s121, %s135
    %p137 = scmp.eq.s32.totalorder %s27, 0
    %p138 = por %p136, %p137
    %s140 = sadd.s32 %s139, 1
    %p143 = scmp.eq.s32.totalorder %s21, 1
    %p144 = scmp.ne.s32.totalorder %s139, %s141
    %p145 = scmp.eq.s32.totalorder %s21, 0
    %p146 = por %p144, %p145
    %p147 = scmp.ne.s32.totalorder %s139, %s141
    %p148 = scmp.eq.s32.totalorder %s26, 1
    %p149 = por %p147, %p148
    %p150 = scmp.ne.s32.totalorder %s141, %s142
    %p151 = scmp.eq.s32.totalorder %s26, 0
    %p152 = por %p150, %p151
    %p153 = scmp.ne.s32.totalorder %s141, %s142
    %p154 = scmp.eq.s32.totalorder %s27, 1
    %p155 = por %p153, %p154
    %p157 = scmp.ne.s32.totalorder %s142, %s156
    %p158 = scmp.eq.s32.totalorder %s27, 0
    %p159 = por %p157, %p158
    %s161 = sadd.s32 %s160, 1
    %p164 = scmp.eq.s32.totalorder %s21, 1
    %p165 = scmp.ne.s32.totalorder %s160, %s162
    %p166 = scmp.eq.s32.totalorder %s21, 0
    %p167 = por %p165, %p166
    %p168 = scmp.ne.s32.totalorder %s160, %s162
    %p169 = scmp.eq.s32.totalorder %s26, 1
    %p170 = por %p168, %p169
    %p171 = scmp.ne.s32.totalorder %s162, %s163
    %p172 = scmp.eq.s32.totalorder %s26, 0
    %p173 = por %p171, %p172
    %p174 = scmp.ne.s32.totalorder %s162, %s163
    %p175 = scmp.eq.s32.totalorder %s27, 1
    %p176 = por %p174, %p175
    %p178 = scmp.ne.s32.totalorder %s163, %s177
    %p179 = scmp.eq.s32.totalorder %s27, 0
    %p180 = por %p178, %p179
    %s182 = sadd.s32 %s181, 1
    %p185 = scmp.eq.s32.totalorder %s21, 1
    %p186 = scmp.ne.s32.totalorder %s181, %s183
    %p187 = scmp.eq.s32.totalorder %s21, 0
    %p188 = por %p186, %p187
    %p189 = scmp.ne.s32.totalorder %s181, %s183
    %p190 = scmp.eq.s32.totalorder %s26, 1
    %p191 = por %p189, %p190
    %p192 = scmp.ne.s32.totalorder %s183, %s184
    %p193 = scmp.eq.s32.totalorder %s26, 0
    %p194 = por %p192, %p193
    %p195 = scmp.ne.s32.totalorder %s183, %s184
    %p196 = scmp.eq.s32.totalorder %s27, 1
    %p197 = por %p195, %p196
    %p199 = scmp.ne.s32.totalorder %s184, %s198
    %p200 = scmp.eq.s32.totalorder %s27, 0
    %p201 = por %p199, %p200
    %s203 = sadd.s32 %s202, 1
    %p206 = scmp.eq.s32.totalorder %s21, 1
    %p207 = scmp.ne.s32.totalorder %s202, %s204
    %p208 = scmp.eq.s32.totalorder %s21, 0
    %p209 = por %p207, %p208
    %p210 = scmp.ne.s32.totalorder %s202, %s204
    %p211 = scmp.eq.s32.totalorder %s26, 1
    %p212 = por %p210, %p211
    %p213 = scmp.ne.s32.totalorder %s204, %s205
    %p214 = scmp.eq.s32.totalorder %s26, 0
    %p215 = por %p213, %p214
    %p216 = scmp.ne.s32.totalorder %s204, %s205
    %p217 = scmp.eq.s32.totalorder %s27, 1
    %p218 = por %p216, %p217
    %p220 = scmp.ne.s32.totalorder %s205, %s219
    %p221 = scmp.eq.s32.totalorder %s27, 0
    %p222 = por %p220, %p221
    %s224 = sadd.s32 %s223, 1
    %p227 = scmp.eq.s32.totalorder %s21, 1
    %p228 = scmp.ne.s32.totalorder %s223, %s225
    %p229 = scmp.eq.s32.totalorder %s21, 0
    %p230 = por %p228, %p229
    %p231 = scmp.ne.s32.totalorder %s223, %s225
    %p232 = scmp.eq.s32.totalorder %s26, 1
    %p233 = por %p231, %p232
    %p234 = scmp.ne.s32.totalorder %s225, %s226
    %p235 = scmp.eq.s32.totalorder %s26, 0
    %p236 = por %p234, %p235
    %p237 = scmp.ne.s32.totalorder %s225, %s226
    %p238 = scmp.eq.s32.totalorder %s27, 1
    %p239 = por %p237, %p238
    %p241 = scmp.ne.s32.totalorder %s226, %s240
    %p242 = scmp.eq.s32.totalorder %s27, 0
    %p243 = por %p241, %p242
    %s245 = sadd.s32 %s244, 1
    %p248 = scmp.eq.s32.totalorder %s21, 1
    %p249 = scmp.ne.s32.totalorder %s244, %s246
    %p250 = scmp.eq.s32.totalorder %s21, 0
    %p251 = por %p249, %p250
    %p252 = scmp.ne.s32.totalorder %s244, %s246
    %p253 = scmp.eq.s32.totalorder %s26, 1
    %p254 = por %p252, %p253
    %p255 = scmp.ne.s32.totalorder %s246, %s247
    %p256 = scmp.eq.s32.totalorder %s26, 0
    %p257 = por %p255, %p256
    %p258 = scmp.ne.s32.totalorder %s246, %s247
    %p259 = scmp.eq.s32.totalorder %s27, 1
    %p260 = por %p258, %p259
    %p262 = scmp.ne.s32.totalorder %s247, %s261
    %p263 = scmp.eq.s32.totalorder %s27, 0
    %p264 = por %p262, %p263
    %s266 = sadd.s32 %s265, 1
    %p269 = scmp.eq.s32.totalorder %s21, 1
    %p270 = scmp.ne.s32.totalorder %s265, %s267
    %p271 = scmp.eq.s32.totalorder %s21, 0
    %p272 = por %p270, %p271
    %p273 = scmp.ne.s32.totalorder %s265, %s267
    %p274 = scmp.eq.s32.totalorder %s26, 1
    %p275 = por %p273, %p274
    %p276 = scmp.ne.s32.totalorder %s267, %s268
    %p277 = scmp.eq.s32.totalorder %s26, 0
    %p278 = por %p276, %p277
    %p279 = scmp.ne.s32.totalorder %s267, %s268
    %p280 = scmp.eq.s32.totalorder %s27, 1
    %p281 = por %p279, %p280
    %p283 = scmp.ne.s32.totalorder %s268, %s282
    %p284 = scmp.eq.s32.totalorder %s27, 0
    %p285 = por %p283, %p284
    %s287 = sadd.s32 %s286, 1
    %p290 = scmp.eq.s32.totalorder %s21, 1
    %p291 = scmp.ne.s32.totalorder %s286, %s288
    %p292 = scmp.eq.s32.totalorder %s21, 0
    %p293 = por %p291, %p292
    %p294 = scmp.ne.s32.totalorder %s286, %s288
    %p295 = scmp.eq.s32.totalorder %s26, 1
    %p296 = por %p294, %p295
    %p297 = scmp.ne.s32.totalorder %s288, %s289
    %p298 = scmp.eq.s32.totalorder %s26, 0
    %p299 = por %p297, %p298
    %p300 = scmp.ne.s32.totalorder %s288, %s289
    %p301 = scmp.eq.s32.totalorder %s27, 1
    %p302 = por %p300, %p301
    %p304 = scmp.ne.s32.totalorder %s289, %s303
    %p305 = scmp.eq.s32.totalorder %s27, 0
    %p306 = por %p304, %p305
    %s307 = ssub.s32 %s21, %s28
    %p308 = scmp.eq.s32.totalorder %s307, 0
    %s310 = sadd.s32 %s309, 1
    %s311 = scalar_select %p308, %s309, %s310
    %p314 = pneg %p308
    %p315 = scmp.eq.s32.totalorder %s21, 1
    %p316 = por %p314, %p315
    %p317 = scmp.ne.s32.totalorder %s309, %s312
    %p318 = scmp.eq.s32.totalorder %s21, 0
    %p319 = por %p317, %p318
    %p320 = scmp.ne.s32.totalorder %s309, %s312
    %p321 = scmp.eq.s32.totalorder %s26, 1
    %p322 = por %p320, %p321
    %p323 = scmp.ne.s32.totalorder %s312, %s313
    %p324 = scmp.eq.s32.totalorder %s26, 0
    %p325 = por %p323, %p324
    %p326 = scmp.ne.s32.totalorder %s312, %s313
    %p327 = scmp.eq.s32.totalorder %s27, 1
    %p328 = por %p326, %p327
    %p330 = scmp.ne.s32.totalorder %s313, %s329
    %p331 = scmp.eq.s32.totalorder %s27, 0
    %p332 = por %p330, %p331
    %p333 = scmp.le.s32.totalorder 1, %s21
    %p334 = scmp.lt.s32.totalorder %s21, 3
    %p335 = pnand %p333, %p334
    %p336 = pneg %p335
    // Predicated region
    $region9: #{tpu_custom_call.1} parent=5 // pred_check
      _
    $region10: #{tpu_custom_call.1} parent=5 // pred_check_branch
      %338 = sbr.rel (%p335) target = $region12
    $region11: #{tpu_custom_call.1} parent=5 // pred_region
      %s339 = ssub.s32 %s21, 1
      // Predicated region
      $region13: #{tpu_custom_call.1} parent=11 // pred_check
        %p340 = pneg %p68
      $region14: #{tpu_custom_call.1} parent=11 // pred_check_branch
        %342 = sbr.rel (%p340) target = $region16
      $region15: #{tpu_custom_call.1} parent=11 // pred_region
        _
      $region16: #{tpu_custom_call.1} parent=11 // pred_fallthru
        _
      // Predicated region
      $region17: #{tpu_custom_call.1} parent=11 // pred_check
        %p343 = pneg %p89
      $region18: #{tpu_custom_call.1} parent=11 // pred_check_branch
        %345 = sbr.rel (%p343) target = $region20
      $region19: #{tpu_custom_call.1} parent=11 // pred_region
        _
      $region20: #{tpu_custom_call.1} parent=11 // pred_fallthru
        _
      // Predicated region
      $region21: #{tpu_custom_call.1} parent=11 // pred_check
        %p346 = pneg %p110
      $region22: #{tpu_custom_call.1} parent=11 // pred_check_branch
        %348 = sbr.rel (%p346) target = $region24
      $region23: #{tpu_custom_call.1} parent=11 // pred_region
        _
      $region24: #{tpu_custom_call.1} parent=11 // pred_fallthru
        _
      // Predicated region
      $region25: #{tpu_custom_call.1} parent=11 // pred_check
        %p349 = pneg %p131
      $region26: #{tpu_custom_call.1} parent=11 // pred_check_branch
        %351 = sbr.rel (%p349) target = $region28
      $region27: #{tpu_custom_call.1} parent=11 // pred_region
        _
      $region28: #{tpu_custom_call.1} parent=11 // pred_fallthru
        _
      // Predicated region
      $region29: #{tpu_custom_call.1} parent=11 // pred_check
        %p352 = pneg %p152
      $region30: #{tpu_custom_call.1} parent=11 // pred_check_branch
        %354 = sbr.rel (%p352) target = $region32
      $region31: #{tpu_custom_call.1} parent=11 // pred_region
        _
      $region32: #{tpu_custom_call.1} parent=11 // pred_fallthru
        _
      // Predicated region
      $region33: #{tpu_custom_call.1} parent=11 // pred_check
        %p355 = pneg %p173
      $region34: #{tpu_custom_call.1} parent=11 // pred_check_branch
        %357 = sbr.rel (%p355) target = $region36
      $region35: #{tpu_custom_call.1} parent=11 // pred_region
        _
      $region36: #{tpu_custom_call.1} parent=11 // pred_fallthru
        _
      // Predicated region
      $region37: #{tpu_custom_call.1} parent=11 // pred_check
        %p358 = pneg %p194
      $region38: #{tpu_custom_call.1} parent=11 // pred_check_branch
        %360 = sbr.rel (%p358) target = $region40
      $region39: #{tpu_custom_call.1} parent=11 // pred_region
        _
      $region40: #{tpu_custom_call.1} parent=11 // pred_fallthru
        _
      // Predicated region
      $region41: #{tpu_custom_call.1} parent=11 // pred_check
        %p361 = pneg %p215
      $region42: #{tpu_custom_call.1} parent=11 // pred_check_branch
        %363 = sbr.rel (%p361) target = $region44
      $region43: #{tpu_custom_call.1} parent=11 // pred_region
        _
      $region44: #{tpu_custom_call.1} parent=11 // pred_fallthru
        _
      // Predicated region
      $region45: #{tpu_custom_call.1} parent=11 // pred_check
        %p364 = pneg %p236
      $region46: #{tpu_custom_call.1} parent=11 // pred_check_branch
        %366 = sbr.rel (%p364) target = $region48
      $region47: #{tpu_custom_call.1} parent=11 // pred_region
        _
      $region48: #{tpu_custom_call.1} parent=11 // pred_fallthru
        _
      // Predicated region
      $region49: #{tpu_custom_call.1} parent=11 // pred_check
        %p367 = pneg %p257
      $region50: #{tpu_custom_call.1} parent=11 // pred_check_branch
        %369 = sbr.rel (%p367) target = $region52
      $region51: #{tpu_custom_call.1} parent=11 // pred_region
        _
      $region52: #{tpu_custom_call.1} parent=11 // pred_fallthru
        _
      // Predicated region
      $region53: #{tpu_custom_call.1} parent=11 // pred_check
        %p370 = pneg %p278
      $region54: #{tpu_custom_call.1} parent=11 // pred_check_branch
        %372 = sbr.rel (%p370) target = $region56
      $region55: #{tpu_custom_call.1} parent=11 // pred_region
        _
      $region56: #{tpu_custom_call.1} parent=11 // pred_fallthru
        _
      // Predicated region
      $region57: #{tpu_custom_call.1} parent=11 // pred_check
        %p373 = pneg %p299
      $region58: #{tpu_custom_call.1} parent=11 // pred_check_branch
        %375 = sbr.rel (%p373) target = $region60
      $region59: #{tpu_custom_call.1} parent=11 // pred_region
        _
      $region60: #{tpu_custom_call.1} parent=11 // pred_fallthru
        _
    $region12: #{tpu_custom_call.1} parent=5 // pred_fallthru
      _
    %p376 = scmp.lt.s32.totalorder %s21, 2
    // Predicated region
    $region61: #{tpu_custom_call.1} parent=5 // pred_check
      %p377 = pneg %p376
    $region62: #{tpu_custom_call.1} parent=5 // pred_check_branch
      %379 = sbr.rel (%p377) target = $region64
    $region63: #{tpu_custom_call.1} parent=5 // pred_region
      // Predicated region
      $region65: #{tpu_custom_call.1} parent=63 // pred_check
        %p380 = pneg %p41
      $region66: #{tpu_custom_call.1} parent=63 // pred_check_branch
        %382 = sbr.rel (%p380) target = $region68
      $region67: #{tpu_custom_call.1} parent=63 // pred_region
        %p383 = scmp.lt.s32.totalorder %s21, 1
        %s384 = scalar_select %p383, %s21, 1
        %s385 = smul.addr %s384, 8
        %s386 = scalar_lea.vmem %s0, %s385
      $region68: #{tpu_custom_call.1} parent=63 // pred_fallthru
        _
    $region64: #{tpu_custom_call.1} parent=5 // pred_fallthru
      _
    %p387 = scmp.le.s32.totalorder 1, %s21
    %p388 = scmp.lt.s32.totalorder %s21, 3
    %p389 = pnand %p387, %p388
    %p390 = pneg %p389
    // Predicated region
    $region69: #{tpu_custom_call.1} parent=5 // pred_check
      _
    $region70: #{tpu_custom_call.1} parent=5 // pred_check_branch
      %392 = sbr.rel (%p389) target = $region72
    $region71: #{tpu_custom_call.1} parent=5 // pred_region
      %s393 = ssub.s32 %s21, 1
      %p394 = scmp.lt.s32.totalorder %s26, 1
      %s395 = scalar_select %p394, %s26, 1
      %s396 = smul.addr %s395, 8
      %s397 = scalar_lea.vmem %s0, %s396
      %p398 = pneg %p47
      %p399 = pneg %p44
      %p400 = pneg %p68
      %p401 = pneg %p65
      %p402 = pneg %p89
      %p403 = pneg %p86
      %p404 = pneg %p110
      %p405 = pneg %p107
      %p406 = pneg %p131
      %p407 = pneg %p128
      %p408 = pneg %p152
      %p409 = pneg %p149
      %p410 = pneg %p173
      %p411 = pneg %p170
      %p412 = pneg %p194
      %p413 = pneg %p191
      %p414 = pneg %p215
      %p415 = pneg %p212
      %p416 = pneg %p236
      %p417 = pneg %p233
      %p418 = pneg %p257
      %p419 = pneg %p254
      %p420 = pneg %p278
      %p421 = pneg %p275
      %p422 = pneg %p299
      %p423 = pneg %p296
      %p424 = pneg %p325
      %p425 = pneg %p322
      %p426 = scmp.lt.s32.totalorder %s26, 1
      %s427 = scalar_select %p426, %s26, 1
      %s428 = scalar_lea.vmem %s13, %s427
      %p429 = scmp.lt.s32.totalorder %s26, 1
      %s430 = scalar_select %p429, %s26, 1
      %s431 = smul.addr %s430, 8
      %s432 = scalar_lea.vmem %s0, %s431
      %p433 = scmp.lt.s32.totalorder %s26, 1
      %s434 = scalar_select %p433, %s26, 1
      %s435 = scalar_lea.vmem %s13, %s434
      %v436 = vld [vmem:[%s432] sm:$0xff]
      %v437 = vlaneseq
      %v438 = vand.u32 %v437, 127
      %439 = vset.pattern.permute.xlu0 0
      %440 = vperm.xlu0 %439, %v436
      %v441 = vpop.permute.xlu0 %440
      %vm442 = vcmp.eq.s32.totalorder %v438, %v441
      %v443 = vsel %vm442, 1, 0
      %v444 = vcvt.s32.f32 %v443
      %v445 = vld [vmem:[%s1] sm:$0xff]
      %v446 = vld [vmem:[%s1 + $0x8] sm:$0xff]
      %v447 = vld [vmem:[%s1 + $0x10] sm:$0xff]
      %v448 = vld [vmem:[%s1 + $0x18] sm:$0xff]
      %v449 = vld [vmem:[%s1 + $0x20] sm:$0xff]
      %v450 = vld [vmem:[%s1 + $0x28] sm:$0xff]
      %v451 = vld [vmem:[%s1 + $0x30] sm:$0xff]
      %v452 = vld [vmem:[%s1 + $0x38] sm:$0xff]
      %v453 = vld [vmem:[%s1 + $0x40] sm:$0xff]
      %v454 = vld [vmem:[%s1 + $0x48] sm:$0xff]
      %v455 = vld [vmem:[%s1 + $0x50] sm:$0xff]
      %v456 = vld [vmem:[%s1 + $0x58] sm:$0xff]
      %v457 = vld [vmem:[%s1 + $0x60] sm:$0xf]
      %v458 = vld [vmem:[%s2] sm:$0xff]
      %vm459 = vcmask 818176
      %v461 = vsel %vm459, %v444, 0
      %vm463 = vcmask 1043456
      %v465 = vsel %vm463, %v457, 0
      %467 = vmatprep.subr.mxu0 0.0
      %468 = vmatpush1.msra.mxu0 %v445
      %469 = vmatprep.subr.mxu0 0.0
      %470 = vmatpush1.msra.mxu0 %v446
      %471 = vmatprep.subr.mxu0 0.0
      %472 = vmatpush1.msra.mxu0 %v447
      %473 = vmatprep.subr.mxu0 0.0
      %474 = vmatpush1.msra.mxu0 %v448
      %475 = vmatprep.subr.mxu0 0.0
      %476 = vmatpush1.msra.mxu0 %v449
      %477 = vmatprep.subr.mxu0 0.0
      %478 = vmatpush1.msra.mxu0 %v450
      %479 = vmatprep.subr.mxu0 0.0
      %480 = vmatpush1.msra.mxu0 %v451
      %481 = vmatprep.subr.mxu0 0.0
      %482 = vmatpush1.msra.mxu0 %v452
      %483 = vmatprep.subr.mxu0 0.0
      %484 = vmatpush1.msra.mxu0 %v453
      %485 = vmatprep.subr.mxu0 0.0
      %486 = vmatpush1.msra.mxu0 %v454
      %487 = vmatprep.subr.mxu0 0.0
      %488 = vmatpush1.msra.mxu0 %v455
      %489 = vmatprep.subr.mxu0 0.0
      %490 = vmatpush1.msra.mxu0 %v456
      %491 = vmatprep.subr.mxu0 0.0
      %492 = vmatpush1.msra.mxu0 %v465
      %493 = vmatprep.subr.mxu0 0.0
      %494 = vmatpush1.msra.mxu0 0.0
      %495 = vmatprep.subr.mxu0 0.0
      %496 = vmatpush1.msra.mxu0 0.0
      %497 = vmatprep.subr.mxu0 0.0
      %498 = vmatpush1.msra.mxu0 0.0
      %499 = vmatprep.subr.mxu0 0.0
      %500 = vmatpush1.msra.mxu0 0.0
      %501 = vmatprep.subr.mxu0 0.0
      %502 = vmatpush1.msra.mxu0 0.0
      %503 = vmatprep.subr.mxu0 0.0
      %504 = vmatpush1.msra.mxu0 0.0
      %505 = vmatprep.subr.mxu0 0.0
      %506 = vmatpush1.msra.mxu0 0.0
      %507 = vmatprep.subr.mxu0 0.0
      %508 = vmatpush1.msra.mxu0 0.0
      %509 = vmatprep.subr.mxu0 0.0
      %510 = vmatpush1.msra.mxu0 0.0
      %511 = vmatprep.subr.mxu0 0.0
      %512 = vmatpush1.msra.mxu0 0.0
      %513 = vmatprep.subr.mxu0 0.0
      %514 = vmatpush1.msra.mxu0 0.0
      %515 = vmatprep.subr.mxu0 0.0
      %516 = vmatpush1.msra.mxu0 0.0
      %517 = vmatprep.subr.mxu0 0.0
      %518 = vmatpush1.msra.mxu0 0.0
      %519 = vmatprep.subr.mxu0 0.0
      %520 = vmatpush1.msra.mxu0 0.0
      %521 = vmatprep.subr.mxu0 0.0
      %522 = vmatpush1.msra.mxu0 0.0
      %523 = vmatprep.subr.mxu0 0.0
      %524 = vmatpush1.msra.mxu0 0.0
      %525 = vmatprep.subr.mxu0 0.0
      %526 = vmatpush1.msra.mxu0 0.0
      %527 = vmatprep.subr.mxu0 0.0
      %528 = vmatpush1.msra.mxu0 0.0
      %529 = vmatprep.subr.mxu0 0.0
      %530 = vmatpush1.msra.mxu0 0.0
      %531 = vmatprep.mubr.f32.mxu0 0.0
      %532 = vmatmul.mubr.f32.gmra.mrb[0].mxu0 %v461
      %v533 = vpop.f32.mrb[0].mxu0
      %v534 = vadd.f32 %v458, %v533
      %v535 = vpop.f32.mrb[0].mxu0
      %536 = vdwg.mxu0
      %vm537 = vcmask 261120
      %v538 = vsel %vm537, %v534, 0.0
      %539 = vadd.xlane.f32.xlu0 %v538
      %v540 = vpop.xlane.xlu0 %539
      %v541 = vrcp.pop 32.0
      %v542 = vmul.f32 %v540, %v541
      %v543 = vsub.f32 %v534, %v542
      %v544 = vmul.f32 %v543, %v543
      %v545 = vsel %vm537, %v544, 0.0
      %546 = vadd.xlane.f32.xlu0 %v545
      %v547 = vpop.xlane.xlu0 %546
      %v548 = vmul.f32 %v547, %v541
      %v549 = vadd.f32 %v548, 1e-05
      %v550 = vrsqrt.pop %v549
      %v551 = vmul.f32 %v543, %v550
      %v552 = vld [vmem:[%s3] sm:$0x1]
      %v554 = vlaneseq
      %v555 = vshrl.u32 %v554, 7
      %v556 = vsub.s32 0, %v555
      %v557 = vrot.slane %v552, %v556
      %v559 = vmul.f32 %v551, %v557
      %v560 = vld [vmem:[%s4] sm:$0x1]
      %v562 = vlaneseq
      %v563 = vshrl.u32 %v562, 7
      %v564 = vsub.s32 0, %v563
      %v565 = vrot.slane %v560, %v564
      %v567 = vadd.f32 %v559, %v565
      %v568 = vld [vmem:[%s5] sm:$0xff]
      %v569 = vld [vmem:[%s5 + $0x8] sm:$0xff]
      %v570 = vld [vmem:[%s5 + $0x10] sm:$0xff]
      %v571 = vld [vmem:[%s5 + $0x18] sm:$0xff]
      %v572 = vld [vmem:[%s6] sm:$0x1]
      %v574 = vlaneseq
      %v575 = vshrl.u32 %v574, 7
      %v576 = vsub.s32 0, %v575
      %v577 = vrot.slane %v572, %v576
      %v580 = vsel %vm537, %v567, 0
      %582 = vmatprep.subr.mxu0 0.0
      %583 = vmatpush1.msra.mxu0 %v568
      %584 = vmatprep.subr.mxu0 0.0
      %585 = vmatpush1.msra.mxu0 %v569
      %586 = vmatprep.subr.mxu0 0.0
      %587 = vmatpush1.msra.mxu0 %v570
      %588 = vmatprep.subr.mxu0 0.0
      %589 = vmatpush1.msra.mxu0 %v571
      %590 = vmatprep.subr.mxu0 0.0
      %591 = vmatpush1.msra.mxu0 0.0
      %592 = vmatprep.subr.mxu0 0.0
      %593 = vmatpush1.msra.mxu0 0.0
      %594 = vmatprep.subr.mxu0 0.0
      %595 = vmatpush1.msra.mxu0 0.0
      %596 = vmatprep.subr.mxu0 0.0
      %597 = vmatpush1.msra.mxu0 0.0
      %598 = vmatprep.subr.mxu0 0.0
      %599 = vmatpush1.msra.mxu0 0.0
      %600 = vmatprep.subr.mxu0 0.0
      %601 = vmatpush1.msra.mxu0 0.0
      %602 = vmatprep.subr.mxu0 0.0
      %603 = vmatpush1.msra.mxu0 0.0
      %604 = vmatprep.subr.mxu0 0.0
      %605 = vmatpush1.msra.mxu0 0.0
      %606 = vmatprep.subr.mxu0 0.0
      %607 = vmatpush1.msra.mxu0 0.0
      %608 = vmatprep.subr.mxu0 0.0
      %609 = vmatpush1.msra.mxu0 0.0
      %610 = vmatprep.subr.mxu0 0.0
      %611 = vmatpush1.msra.mxu0 0.0
      %612 = vmatprep.subr.mxu0 0.0
      %613 = vmatpush1.msra.mxu0 0.0
      %614 = vmatprep.subr.mxu0 0.0
      %615 = vmatpush1.msra.mxu0 0.0
      %616 = vmatprep.subr.mxu0 0.0
      %617 = vmatpush1.msra.mxu0 0.0
      %618 = vmatprep.subr.mxu0 0.0
      %619 = vmatpush1.msra.mxu0 0.0
      %620 = vmatprep.subr.mxu0 0.0
      %621 = vmatpush1.msra.mxu0 0.0
      %622 = vmatprep.subr.mxu0 0.0
      %623 = vmatpush1.msra.mxu0 0.0
      %624 = vmatprep.subr.mxu0 0.0
      %625 = vmatpush1.msra.mxu0 0.0
      %626 = vmatprep.subr.mxu0 0.0
      %627 = vmatpush1.msra.mxu0 0.0
      %628 = vmatprep.subr.mxu0 0.0
      %629 = vmatpush1.msra.mxu0 0.0
      %630 = vmatprep.subr.mxu0 0.0
      %631 = vmatpush1.msra.mxu0 0.0
      %632 = vmatprep.subr.mxu0 0.0
      %633 = vmatpush1.msra.mxu0 0.0
      %634 = vmatprep.subr.mxu0 0.0
      %635 = vmatpush1.msra.mxu0 0.0
      %636 = vmatprep.subr.mxu0 0.0
      %637 = vmatpush1.msra.mxu0 0.0
      %638 = vmatprep.subr.mxu0 0.0
      %639 = vmatpush1.msra.mxu0 0.0
      %640 = vmatprep.subr.mxu0 0.0
      %641 = vmatpush1.msra.mxu0 0.0
      %642 = vmatprep.subr.mxu0 0.0
      %643 = vmatpush1.msra.mxu0 0.0
      %644 = vmatprep.subr.mxu0 0.0
      %645 = vmatpush1.msra.mxu0 0.0
      %646 = vmatprep.mubr.f32.mxu0 0.0
      %647 = vmatmul.mubr.f32.gmra.mrb[0].mxu0 %v580
      %v648 = vpop.f32.mrb[0].mxu0
      %v649 = vadd.f32 %v577, %v648
      %v650 = vpop.f32.mrb[0].mxu0
      %651 = vdwg.mxu0
      %v652 = vmul.f32 %v649, 0.35355338
      %vm653 = vcmp.ge.s32.totalorder %v438, 0
      %vm654 = vcmp.lt.s32.totalorder %v438, 8
      %vm655 = vmand %vm653, %vm654
      %v656 = vsel %vm655, 1, 0
      %v657 = vcvt.s32.f32 %v656
      %v658 = vmul.f32 %v652, %v657
      %660 = vrot.lane.b32.xlu0 %v649, 96
      %v661 = vpop.permute.xlu0 %660
      %v663 = vsel %vm537, %v658, 0
      %v665 = vsel %vm537, %v661, 0
      %667 = vmatprep.subr.mxu0 0.0
      %668 = vmatpush1.xpose.msra.mxu0 %v665
      %669 = vmatprep.subr.mxu0 0.0
      %670 = vmatpush1.xpose.msra.mxu0 0.0
      %671 = vmatprep.subr.mxu0 0.0
      %672 = vmatpush1.xpose.msra.mxu0 0.0
      %673 = vmatprep.subr.mxu0 0.0
      %674 = vmatpush1.xpose.msra.mxu0 0.0
      %675 = vmatprep.subr.mxu0 0.0
      %676 = vmatpush1.xpose.msra.mxu0 0.0
      %677 = vmatprep.subr.mxu0 0.0
      %678 = vmatpush1.xpose.msra.mxu0 0.0
      %679 = vmatprep.subr.mxu0 0.0
      %680 = vmatpush1.xpose.msra.mxu0 0.0
      %681 = vmatprep.subr.mxu0 0.0
      %682 = vmatpush1.xpose.msra.mxu0 0.0
      %683 = vmatprep.subr.mxu0 0.0
      %684 = vmatpush1.xpose.msra.mxu0 0.0
      %685 = vmatprep.subr.mxu0 0.0
      %686 = vmatpush1.xpose.msra.mxu0 0.0
      %687 = vmatprep.subr.mxu0 0.0
      %688 = vmatpush1.xpose.msra.mxu0 0.0
      %689 = vmatprep.subr.mxu0 0.0
      %690 = vmatpush1.xpose.msra.mxu0 0.0
      %691 = vmatprep.subr.mxu0 0.0
      %692 = vmatpush1.xpose.msra.mxu0 0.0
      %693 = vmatprep.subr.mxu0 0.0
      %694 = vmatpush1.xpose.msra.mxu0 0.0
      %695 = vmatprep.subr.mxu0 0.0
      %696 = vmatpush1.xpose.msra.mxu0 0.0
      %697 = vmatprep.subr.mxu0 0.0
      %698 = vmatpush1.xpose.msra.mxu0 0.0
      %699 = vmatprep.subr.mxu0 0.0
      %700 = vmatpush1.xpose.msra.mxu0 0.0
      %701 = vmatprep.subr.mxu0 0.0
      %702 = vmatpush1.xpose.msra.mxu0 0.0
      %703 = vmatprep.subr.mxu0 0.0
      %704 = vmatpush1.xpose.msra.mxu0 0.0
      %705 = vmatprep.subr.mxu0 0.0
      %706 = vmatpush1.xpose.msra.mxu0 0.0
      %707 = vmatprep.subr.mxu0 0.0
      %708 = vmatpush1.xpose.msra.mxu0 0.0
      %709 = vmatprep.subr.mxu0 0.0
      %710 = vmatpush1.xpose.msra.mxu0 0.0
      %711 = vmatprep.subr.mxu0 0.0
      %712 = vmatpush1.xpose.msra.mxu0 0.0
      %713 = vmatprep.subr.mxu0 0.0
      %714 = vmatpush1.xpose.msra.mxu0 0.0
      %715 = vmatprep.subr.mxu0 0.0
      %716 = vmatpush1.xpose.msra.mxu0 0.0
      %717 = vmatprep.subr.mxu0 0.0
      %718 = vmatpush1.xpose.msra.mxu0 0.0
      %719 = vmatprep.subr.mxu0 0.0
      %720 = vmatpush1.xpose.msra.mxu0 0.0
      %721 = vmatprep.subr.mxu0 0.0
      %722 = vmatpush1.xpose.msra.mxu0 0.0
      %723 = vmatprep.subr.mxu0 0.0
      %724 = vmatpush1.xpose.msra.mxu0 0.0
      %725 = vmatprep.subr.mxu0 0.0
      %726 = vmatpush1.xpose.msra.mxu0 0.0
      %727 = vmatprep.subr.mxu0 0.0
      %728 = vmatpush1.xpose.msra.mxu0 0.0
      %729 = vmatprep.subr.mxu0 0.0
      %730 = vmatpush1.xpose.msra.mxu0 0.0
      %731 = vmatprep.mubr.f32.mxu0 0.0
      %732 = vmatmul.mubr.f32.gmra.mrb[0].mxu0 %v663
      %v733 = vpop.f32.mrb[0].mxu0
      %v734 = vadd.f32 0.0, %v733
      %v735 = vpop.f32.mrb[0].mxu0
      %736 = vdwg.mxu0
      %vm737 = vcmask 57344
      %v738 = vsel %vm737, %v734, -inf
      %739 = vmax.xlane.f32.xlu0 %v738
      %v740 = vpop.xlane.xlu0 %739
      %v741 = vsub.f32 %v734, %v740
      %v742 = vmul.f32 %v741, 1.442695
      %v743 = vpow.pop %v742
      %v744 = vsel %vm737, %v743, 0.0
      %745 = vadd.xlane.f32.xlu0 %v744
      %v746 = vpop.xlane.xlu0 %745
      %v747 = vrcp.pop %v746
      %v748 = vmul.f32 %v743, %v747
      %750 = vrot.lane.b32.xlu0 %v657, 64
      %v751 = vpop.permute.xlu0 %750
      %v753 = vmul.f32 %v649, %v751
      %vm754 = vcmp.ge.s32.totalorder %v438, 8
      %vm755 = vcmp.lt.s32.totalorder %v438, 16
      %vm756 = vmand %vm754, %vm755
      %v757 = vsel %vm756, 1, 0
      %v758 = vcvt.s32.f32 %v757
      %v759 = vmul.f32 %v652, %v758
      %v761 = vsel %vm537, %v759, 0
      %763 = vmatprep.subr.mxu0 0.0
      %764 = vmatpush1.xpose.msra.mxu0 %v665
      %765 = vmatprep.subr.mxu0 0.0
      %766 = vmatpush1.xpose.msra.mxu0 0.0
      %767 = vmatprep.subr.mxu0 0.0
      %768 = vmatpush1.xpose.msra.mxu0 0.0
      %769 = vmatprep.subr.mxu0 0.0
      %770 = vmatpush1.xpose.msra.mxu0 0.0
      %771 = vmatprep.subr.mxu0 0.0
      %772 = vmatpush1.xpose.msra.mxu0 0.0
      %773 = vmatprep.subr.mxu0 0.0
      %774 = vmatpush1.xpose.msra.mxu0 0.0
      %775 = vmatprep.subr.mxu0 0.0
      %776 = vmatpush1.xpose.msra.mxu0 0.0
      %777 = vmatprep.subr.mxu0 0.0
      %778 = vmatpush1.xpose.msra.mxu0 0.0
      %779 = vmatprep.subr.mxu0 0.0
      %780 = vmatpush1.xpose.msra.mxu0 0.0
      %781 = vmatprep.subr.mxu0 0.0
      %782 = vmatpush1.xpose.msra.mxu0 0.0
      %783 = vmatprep.subr.mxu0 0.0
      %784 = vmatpush1.xpose.msra.mxu0 0.0
      %785 = vmatprep.subr.mxu0 0.0
      %786 = vmatpush1.xpose.msra.mxu0 0.0
      %787 = vmatprep.subr.mxu0 0.0
      %788 = vmatpush1.xpose.msra.mxu0 0.0
      %789 = vmatprep.subr.mxu0 0.0
      %790 = vmatpush1.xpose.msra.mxu0 0.0
      %791 = vmatprep.subr.mxu0 0.0
      %792 = vmatpush1.xpose.msra.mxu0 0.0
      %793 = vmatprep.subr.mxu0 0.0
      %794 = vmatpush1.xpose.msra.mxu0 0.0
      %795 = vmatprep.subr.mxu0 0.0
      %796 = vmatpush1.xpose.msra.mxu0 0.0
      %797 = vmatprep.subr.mxu0 0.0
      %798 = vmatpush1.xpose.msra.mxu0 0.0
      %799 = vmatprep.subr.mxu0 0.0
      %800 = vmatpush1.xpose.msra.mxu0 0.0
      %801 = vmatprep.subr.mxu0 0.0
      %802 = vmatpush1.xpose.msra.mxu0 0.0
      %803 = vmatprep.subr.mxu0 0.0
      %804 = vmatpush1.xpose.msra.mxu0 0.0
      %805 = vmatprep.subr.mxu0 0.0
      %806 = vmatpush1.xpose.msra.mxu0 0.0
      %807 = vmatprep.subr.mxu0 0.0
      %808 = vmatpush1.xpose.msra.mxu0 0.0
      %809 = vmatprep.subr.mxu0 0.0
      %810 = vmatpush1.xpose.msra.mxu0 0.0
      %811 = vmatprep.subr.mxu0 0.0
      %812 = vmatpush1.xpose.msra.mxu0 0.0
      %813 = vmatprep.subr.mxu0 0.0
      %814 = vmatpush1.xpose.msra.mxu0 0.0
      %815 = vmatprep.subr.mxu0 0.0
      %816 = vmatpush1.xpose.msra.mxu0 0.0
      %817 = vmatprep.subr.mxu0 0.0
      %818 = vmatpush1.xpose.msra.mxu0 0.0
      %819 = vmatprep.subr.mxu0 0.0
      %820 = vmatpush1.xpose.msra.mxu0 0.0
      %821 = vmatprep.subr.mxu0 0.0
      %822 = vmatpush1.xpose.msra.mxu0 0.0
      %823 = vmatprep.subr.mxu0 0.0
      %824 = vmatpush1.xpose.msra.mxu0 0.0
      %825 = vmatprep.subr.mxu0 0.0
      %826 = vmatpush1.xpose.msra.mxu0 0.0
      %827 = vmatprep.mubr.f32.mxu0 0.0
      %828 = vmatmul.mubr.f32.gmra.mrb[0].mxu0 %v761
      %v829 = vpop.f32.mrb[0].mxu0
      %v830 = vadd.f32 0.0, %v829
      %v831 = vpop.f32.mrb[0].mxu0
      %832 = vdwg.mxu0
      %v833 = vsel %vm737, %v830, -inf
      %834 = vmax.xlane.f32.xlu0 %v833
      %v835 = vpop.xlane.xlu0 %834
      %v836 = vsub.f32 %v830, %v835
      %v837 = vmul.f32 %v836, 1.442695
      %v838 = vpow.pop %v837
      %v839 = vsel %vm737, %v838, 0.0
      %840 = vadd.xlane.f32.xlu0 %v839
      %v841 = vpop.xlane.xlu0 %840
      %v842 = vrcp.pop %v841
      %v843 = vmul.f32 %v838, %v842
      %845 = vrot.lane.b32.xlu0 %v758, 64
      %v846 = vpop.permute.xlu0 %845
      %v848 = vmul.f32 %v649, %v846
      %850 = vrot.lane.b32.xlu0 %v848, 64
      %v851 = vpop.permute.xlu0 %850
      %vm853 = vcmask 64512
      %v855 = vsel %vm853, %v843, 0
      %857 = vmatprep.subr.mxu0 0.0
      %858 = vmatpush1.msra.mxu0 %v851
      %859 = vmatprep.subr.mxu0 0.0
      %860 = vmatpush1.msra.mxu0 0.0
      %861 = vmatprep.subr.mxu0 0.0
      %862 = vmatpush1.msra.mxu0 0.0
      %863 = vmatprep.subr.mxu0 0.0
      %864 = vmatpush1.msra.mxu0 0.0
      %865 = vmatprep.subr.mxu0 0.0
      %866 = vmatpush1.msra.mxu0 0.0
      %867 = vmatprep.subr.mxu0 0.0
      %868 = vmatpush1.msra.mxu0 0.0
      %869 = vmatprep.subr.mxu0 0.0
      %870 = vmatpush1.msra.mxu0 0.0
      %871 = vmatprep.subr.mxu0 0.0
      %872 = vmatpush1.msra.mxu0 0.0
      %873 = vmatprep.subr.mxu0 0.0
      %874 = vmatpush1.msra.mxu0 0.0
      %875 = vmatprep.subr.mxu0 0.0
      %876 = vmatpush1.msra.mxu0 0.0
      %877 = vmatprep.subr.mxu0 0.0
      %878 = vmatpush1.msra.mxu0 0.0
      %879 = vmatprep.subr.mxu0 0.0
      %880 = vmatpush1.msra.mxu0 0.0
      %881 = vmatprep.subr.mxu0 0.0
      %882 = vmatpush1.msra.mxu0 0.0
      %883 = vmatprep.subr.mxu0 0.0
      %884 = vmatpush1.msra.mxu0 0.0
      %885 = vmatprep.subr.mxu0 0.0
      %886 = vmatpush1.msra.mxu0 0.0
      %887 = vmatprep.subr.mxu0 0.0
      %888 = vmatpush1.msra.mxu0 0.0
      %889 = vmatprep.subr.mxu0 0.0
      %890 = vmatpush1.msra.mxu0 0.0
      %891 = vmatprep.subr.mxu0 0.0
      %892 = vmatpush1.msra.mxu0 0.0
      %893 = vmatprep.subr.mxu0 0.0
      %894 = vmatpush1.msra.mxu0 0.0
      %895 = vmatprep.subr.mxu0 0.0
      %896 = vmatpush1.msra.mxu0 0.0
      %897 = vmatprep.subr.mxu0 0.0
      %898 = vmatpush1.msra.mxu0 0.0
      %899 = vmatprep.subr.mxu0 0.0
      %900 = vmatpush1.msra.mxu0 0.0
      %901 = vmatprep.subr.mxu0 0.0
      %902 = vmatpush1.msra.mxu0 0.0
      %903 = vmatprep.subr.mxu0 0.0
      %904 = vmatpush1.msra.mxu0 0.0
      %905 = vmatprep.subr.mxu0 0.0
      %906 = vmatpush1.msra.mxu0 0.0
      %907 = vmatprep.subr.mxu0 0.0
      %908 = vmatpush1.msra.mxu0 0.0
      %909 = vmatprep.subr.mxu0 0.0
      %910 = vmatpush1.msra.mxu0 0.0
      %911 = vmatprep.subr.mxu0 0.0
      %912 = vmatpush1.msra.mxu0 0.0
      %913 = vmatprep.subr.mxu0 0.0
      %914 = vmatpush1.msra.mxu0 0.0
      %915 = vmatprep.subr.mxu0 0.0
      %916 = vmatpush1.msra.mxu0 0.0
      %917 = vmatprep.subr.mxu0 0.0
      %918 = vmatpush1.msra.mxu0 0.0
      %919 = vmatprep.subr.mxu0 0.0
      %920 = vmatpush1.msra.mxu0 0.0
      %921 = vmatprep.mubr.f32.mxu0 0.0
      %922 = vmatmul.mubr.f32.gmra.mrb[0].mxu0 %v855
      %v923 = vpop.f32.mrb[0].mxu0
      %v924 = vadd.f32 0.0, %v923
      %v925 = vpop.f32.mrb[0].mxu0
      %926 = vdwg.mxu0
      %928 = vrot.lane.b32.xlu0 %v753, 64
      %v929 = vpop.permute.xlu0 %928
      %v932 = vsel %vm853, %v748, 0
      %934 = vmatprep.subr.mxu0 0.0
      %935 = vmatpush1.msra.mxu0 %v929
      %936 = vmatprep.subr.mxu0 0.0
      %937 = vmatpush1.msra.mxu0 0.0
      %938 = vmatprep.subr.mxu0 0.0
      %939 = vmatpush1.msra.mxu0 0.0
      %940 = vmatprep.subr.mxu0 0.0
      %941 = vmatpush1.msra.mxu0 0.0
      %942 = vmatprep.subr.mxu0 0.0
      %943 = vmatpush1.msra.mxu0 0.0
      %944 = vmatprep.subr.mxu0 0.0
      %945 = vmatpush1.msra.mxu0 0.0
      %946 = vmatprep.subr.mxu0 0.0
      %947 = vmatpush1.msra.mxu0 0.0
      %948 = vmatprep.subr.mxu0 0.0
      %949 = vmatpush1.msra.mxu0 0.0
      %950 = vmatprep.subr.mxu0 0.0
      %951 = vmatpush1.msra.mxu0 0.0
      %952 = vmatprep.subr.mxu0 0.0
      %953 = vmatpush1.msra.mxu0 0.0
      %954 = vmatprep.subr.mxu0 0.0
      %955 = vmatpush1.msra.mxu0 0.0
      %956 = vmatprep.subr.mxu0 0.0
      %957 = vmatpush1.msra.mxu0 0.0
      %958 = vmatprep.subr.mxu0 0.0
      %959 = vmatpush1.msra.mxu0 0.0
      %960 = vmatprep.subr.mxu0 0.0
      %961 = vmatpush1.msra.mxu0 0.0
      %962 = vmatprep.subr.mxu0 0.0
      %963 = vmatpush1.msra.mxu0 0.0
      %964 = vmatprep.subr.mxu0 0.0
      %965 = vmatpush1.msra.mxu0 0.0
      %966 = vmatprep.subr.mxu0 0.0
      %967 = vmatpush1.msra.mxu0 0.0
      %968 = vmatprep.subr.mxu0 0.0
      %969 = vmatpush1.msra.mxu0 0.0
      %970 = vmatprep.subr.mxu0 0.0
      %971 = vmatpush1.msra.mxu0 0.0
      %972 = vmatprep.subr.mxu0 0.0
      %973 = vmatpush1.msra.mxu0 0.0
      %974 = vmatprep.subr.mxu0 0.0
      %975 = vmatpush1.msra.mxu0 0.0
      %976 = vmatprep.subr.mxu0 0.0
      %977 = vmatpush1.msra.mxu0 0.0
      %978 = vmatprep.subr.mxu0 0.0
      %979 = vmatpush1.msra.mxu0 0.0
      %980 = vmatprep.subr.mxu0 0.0
      %981 = vmatpush1.msra.mxu0 0.0
      %982 = vmatprep.subr.mxu0 0.0
      %983 = vmatpush1.msra.mxu0 0.0
      %984 = vmatprep.subr.mxu0 0.0
      %985 = vmatpush1.msra.mxu0 0.0
      %986 = vmatprep.subr.mxu0 0.0
      %987 = vmatpush1.msra.mxu0 0.0
      %988 = vmatprep.subr.mxu0 0.0
      %989 = vmatpush1.msra.mxu0 0.0
      %990 = vmatprep.subr.mxu0 0.0
      %991 = vmatpush1.msra.mxu0 0.0
      %992 = vmatprep.subr.mxu0 0.0
      %993 = vmatpush1.msra.mxu0 0.0
      %994 = vmatprep.subr.mxu0 0.0
      %995 = vmatpush1.msra.mxu0 0.0
      %996 = vmatprep.subr.mxu0 0.0
      %997 = vmatpush1.msra.mxu0 0.0
      %998 = vmatprep.mubr.f32.mxu0 0.0
      %999 = vmatmul.mubr.f32.gmra.mrb[0].mxu0 %v932
      %v1000 = vpop.f32.mrb[0].mxu0
      %v1001 = vadd.f32 %v924, %v1000
      %v1002 = vpop.f32.mrb[0].mxu0
      %1003 = vdwg.mxu0
      %vm1004 = vcmp.ge.s32.totalorder %v438, 16
      %vm1005 = vcmp.lt.s32.totalorder %v438, 24
      %vm1006 = vmand %vm1004, %vm1005
      %v1007 = vsel %vm1006, 1, 0
      %v1008 = vcvt.s32.f32 %v1007
      %v1009 = vmul.f32 %v652, %v1008
      %v1011 = vsel %vm537, %v1009, 0
      %1013 = vmatprep.subr.mxu0 0.0
      %1014 = vmatpush1.xpose.msra.mxu0 %v665
      %1015 = vmatprep.subr.mxu0 0.0
      %1016 = vmatpush1.xpose.msra.mxu0 0.0
      %1017 = vmatprep.subr.mxu0 0.0
      %1018 = vmatpush1.xpose.msra.mxu0 0.0
      %1019 = vmatprep.subr.mxu0 0.0
      %1020 = vmatpush1.xpose.msra.mxu0 0.0
      %1021 = vmatprep.subr.mxu0 0.0
      %1022 = vmatpush1.xpose.msra.mxu0 0.0
      %1023 = vmatprep.subr.mxu0 0.0
      %1024 = vmatpush1.xpose.msra.mxu0 0.0
      %1025 = vmatprep.subr.mxu0 0.0
      %1026 = vmatpush1.xpose.msra.mxu0 0.0
      %1027 = vmatprep.subr.mxu0 0.0
      %1028 = vmatpush1.xpose.msra.mxu0 0.0
      %1029 = vmatprep.subr.mxu0 0.0
      %1030 = vmatpush1.xpose.msra.mxu0 0.0
      %1031 = vmatprep.subr.mxu0 0.0
      %1032 = vmatpush1.xpose.msra.mxu0 0.0
      %1033 = vmatprep.subr.mxu0 0.0
      %1034 = vmatpush1.xpose.msra.mxu0 0.0
      %1035 = vmatprep.subr.mxu0 0.0
      %1036 = vmatpush1.xpose.msra.mxu0 0.0
      %1037 = vmatprep.subr.mxu0 0.0
      %1038 = vmatpush1.xpose.msra.mxu0 0.0
      %1039 = vmatprep.subr.mxu0 0.0
      %1040 = vmatpush1.xpose.msra.mxu0 0.0
      %1041 = vmatprep.subr.mxu0 0.0
      %1042 = vmatpush1.xpose.msra.mxu0 0.0
      %1043 = vmatprep.subr.mxu0 0.0
      %1044 = vmatpush1.xpose.msra.mxu0 0.0
      %1045 = vmatprep.subr.mxu0 0.0
      %1046 = vmatpush1.xpose.msra.mxu0 0.0
      %1047 = vmatprep.subr.mxu0 0.0
      %1048 = vmatpush1.xpose.msra.mxu0 0.0
      %1049 = vmatprep.subr.mxu0 0.0
      %1050 = vmatpush1.xpose.msra.mxu0 0.0
      %1051 = vmatprep.subr.mxu0 0.0
      %1052 = vmatpush1.xpose.msra.mxu0 0.0
      %1053 = vmatprep.subr.mxu0 0.0
      %1054 = vmatpush1.xpose.msra.mxu0 0.0
      %1055 = vmatprep.subr.mxu0 0.0
      %1056 = vmatpush1.xpose.msra.mxu0 0.0
      %1057 = vmatprep.subr.mxu0 0.0
      %1058 = vmatpush1.xpose.msra.mxu0 0.0
      %1059 = vmatprep.subr.mxu0 0.0
      %1060 = vmatpush1.xpose.msra.mxu0 0.0
      %1061 = vmatprep.subr.mxu0 0.0
      %1062 = vmatpush1.xpose.msra.mxu0 0.0
      %1063 = vmatprep.subr.mxu0 0.0
      %1064 = vmatpush1.xpose.msra.mxu0 0.0
      %1065 = vmatprep.subr.mxu0 0.0
      %1066 = vmatpush1.xpose.msra.mxu0 0.0
      %1067 = vmatprep.subr.mxu0 0.0
      %1068 = vmatpush1.xpose.msra.mxu0 0.0
      %1069 = vmatprep.subr.mxu0 0.0
      %1070 = vmatpush1.xpose.msra.mxu0 0.0
      %1071 = vmatprep.subr.mxu0 0.0
      %1072 = vmatpush1.xpose.msra.mxu0 0.0
      %1073 = vmatprep.subr.mxu0 0.0
      %1074 = vmatpush1.xpose.msra.mxu0 0.0
      %1075 = vmatprep.subr.mxu0 0.0
      %1076 = vmatpush1.xpose.msra.mxu0 0.0
      %1077 = vmatprep.mubr.f32.mxu0 0.0
      %1078 = vmatmul.mubr.f32.gmra.mrb[0].mxu0 %v1011
      %v1079 = vpop.f32.mrb[0].mxu0
      %v1080 = vadd.f32 0.0, %v1079
      %v1081 = vpop.f32.mrb[0].mxu0
      %1082 = vdwg.mxu0
      %v1083 = vsel %vm737, %v1080, -inf
      %1084 = vmax.xlane.f32.xlu0 %v1083
      %v1085 = vpop.xlane.xlu0 %1084
      %v1086 = vsub.f32 %v1080, %v1085
      %v1087 = vmul.f32 %v1086, 1.442695
      %v1088 = vpow.pop %v1087
      %v1089 = vsel %vm737, %v1088, 0.0
      %1090 = vadd.xlane.f32.xlu0 %v1089
      %v1091 = vpop.xlane.xlu0 %1090
      %v1092 = vrcp.pop %v1091
      %v1093 = vmul.f32 %v1088, %v1092
      %1095 = vrot.lane.b32.xlu0 %v1008, 64
      %v1096 = vpop.permute.xlu0 %1095
      %v1098 = vmul.f32 %v649, %v1096
      %1100 = vrot.lane.b32.xlu0 %v1098, 64
      %v1101 = vpop.permute.xlu0 %1100
      %v1104 = vsel %vm853, %v1093, 0
      %1106 = vmatprep.subr.mxu0 0.0
      %1107 = vmatpush1.msra.mxu0 %v1101
      %1108 = vmatprep.subr.mxu0 0.0
      %1109 = vmatpush1.msra.mxu0 0.0
      %1110 = vmatprep.subr.mxu0 0.0
      %1111 = vmatpush1.msra.mxu0 0.0
      %1112 = vmatprep.subr.mxu0 0.0
      %1113 = vmatpush1.msra.mxu0 0.0
      %1114 = vmatprep.subr.mxu0 0.0
      %1115 = vmatpush1.msra.mxu0 0.0
      %1116 = vmatprep.subr.mxu0 0.0
      %1117 = vmatpush1.msra.mxu0 0.0
      %1118 = vmatprep.subr.mxu0 0.0
      %1119 = vmatpush1.msra.mxu0 0.0
      %1120 = vmatprep.subr.mxu0 0.0
      %1121 = vmatpush1.msra.mxu0 0.0
      %1122 = vmatprep.subr.mxu0 0.0
      %1123 = vmatpush1.msra.mxu0 0.0
      %1124 = vmatprep.subr.mxu0 0.0
      %1125 = vmatpush1.msra.mxu0 0.0
      %1126 = vmatprep.subr.mxu0 0.0
      %1127 = vmatpush1.msra.mxu0 0.0
      %1128 = vmatprep.subr.mxu0 0.0
      %1129 = vmatpush1.msra.mxu0 0.0
      %1130 = vmatprep.subr.mxu0 0.0
      %1131 = vmatpush1.msra.mxu0 0.0
      %1132 = vmatprep.subr.mxu0 0.0
      %1133 = vmatpush1.msra.mxu0 0.0
      %1134 = vmatprep.subr.mxu0 0.0
      %1135 = vmatpush1.msra.mxu0 0.0
      %1136 = vmatprep.subr.mxu0 0.0
      %1137 = vmatpush1.msra.mxu0 0.0
      %1138 = vmatprep.subr.mxu0 0.0
      %1139 = vmatpush1.msra.mxu0 0.0
      %1140 = vmatprep.subr.mxu0 0.0
      %1141 = vmatpush1.msra.mxu0 0.0
      %1142 = vmatprep.subr.mxu0 0.0
      %1143 = vmatpush1.msra.mxu0 0.0
      %1144 = vmatprep.subr.mxu0 0.0
      %1145 = vmatpush1.msra.mxu0 0.0
      %1146 = vmatprep.subr.mxu0 0.0
      %1147 = vmatpush1.msra.mxu0 0.0
      %1148 = vmatprep.subr.mxu0 0.0
      %1149 = vmatpush1.msra.mxu0 0.0
      %1150 = vmatprep.subr.mxu0 0.0
      %1151 = vmatpush1.msra.mxu0 0.0
      %1152 = vmatprep.subr.mxu0 0.0
      %1153 = vmatpush1.msra.mxu0 0.0
      %1154 = vmatprep.subr.mxu0 0.0
      %1155 = vmatpush1.msra.mxu0 0.0
      %1156 = vmatprep.subr.mxu0 0.0
      %1157 = vmatpush1.msra.mxu0 0.0
      %1158 = vmatprep.subr.mxu0 0.0
      %1159 = vmatpush1.msra.mxu0 0.0
      %1160 = vmatprep.subr.mxu0 0.0
      %1161 = vmatpush1.msra.mxu0 0.0
      %1162 = vmatprep.subr.mxu0 0.0
      %1163 = vmatpush1.msra.mxu0 0.0
      %1164 = vmatprep.subr.mxu0 0.0
      %1165 = vmatpush1.msra.mxu0 0.0
      %1166 = vmatprep.subr.mxu0 0.0
      %1167 = vmatpush1.msra.mxu0 0.0
      %1168 = vmatprep.subr.mxu0 0.0
      %1169 = vmatpush1.msra.mxu0 0.0
      %1170 = vmatprep.mubr.f32.mxu0 0.0
      %1171 = vmatmul.mubr.f32.gmra.mrb[0].mxu0 %v1104
      %v1172 = vpop.f32.mrb[0].mxu0
      %v1173 = vadd.f32 0.0, %v1172
      %v1174 = vpop.f32.mrb[0].mxu0
      %1175 = vdwg.mxu0
      %v1176 = vadd.f32 %v1001, %v1173
      %vm1177 = vcmp.ge.s32.totalorder %v438, 24
      %vm1178 = vcmp.lt.s32.totalorder %v438, 32
      %vm1179 = vmand %vm1177, %vm1178
      %v1180 = vsel %vm1179, 1, 0
      %v1181 = vcvt.s32.f32 %v1180
      %v1182 = vmul.f32 %v652, %v1181
      %v1184 = vsel %vm537, %v1182, 0
      %1186 = vmatprep.subr.mxu0 0.0
      %1187 = vmatpush1.xpose.msra.mxu0 %v665
      %1188 = vmatprep.subr.mxu0 0.0
      %1189 = vmatpush1.xpose.msra.mxu0 0.0
      %1190 = vmatprep.subr.mxu0 0.0
      %1191 = vmatpush1.xpose.msra.mxu0 0.0
      %1192 = vmatprep.subr.mxu0 0.0
      %1193 = vmatpush1.xpose.msra.mxu0 0.0
      %1194 = vmatprep.subr.mxu0 0.0
      %1195 = vmatpush1.xpose.msra.mxu0 0.0
      %1196 = vmatprep.subr.mxu0 0.0
      %1197 = vmatpush1.xpose.msra.mxu0 0.0
      %1198 = vmatprep.subr.mxu0 0.0
      %1199 = vmatpush1.xpose.msra.mxu0 0.0
      %1200 = vmatprep.subr.mxu0 0.0
      %1201 = vmatpush1.xpose.msra.mxu0 0.0
      %1202 = vmatprep.subr.mxu0 0.0
      %1203 = vmatpush1.xpose.msra.mxu0 0.0
      %1204 = vmatprep.subr.mxu0 0.0
      %1205 = vmatpush1.xpose.msra.mxu0 0.0
      %1206 = vmatprep.subr.mxu0 0.0
      %1207 = vmatpush1.xpose.msra.mxu0 0.0
      %1208 = vmatprep.subr.mxu0 0.0
      %1209 = vmatpush1.xpose.msra.mxu0 0.0
      %1210 = vmatprep.subr.mxu0 0.0
      %1211 = vmatpush1.xpose.msra.mxu0 0.0
      %1212 = vmatprep.subr.mxu0 0.0
      %1213 = vmatpush1.xpose.msra.mxu0 0.0
      %1214 = vmatprep.subr.mxu0 0.0
      %1215 = vmatpush1.xpose.msra.mxu0 0.0
      %1216 = vmatprep.subr.mxu0 0.0
      %1217 = vmatpush1.xpose.msra.mxu0 0.0
      %1218 = vmatprep.subr.mxu0 0.0
      %1219 = vmatpush1.xpose.msra.mxu0 0.0
      %1220 = vmatprep.subr.mxu0 0.0
      %1221 = vmatpush1.xpose.msra.mxu0 0.0
      %1222 = vmatprep.subr.mxu0 0.0
      %1223 = vmatpush1.xpose.msra.mxu0 0.0
      %1224 = vmatprep.subr.mxu0 0.0
      %1225 = vmatpush1.xpose.msra.mxu0 0.0
      %1226 = vmatprep.subr.mxu0 0.0
      %1227 = vmatpush1.xpose.msra.mxu0 0.0
      %1228 = vmatprep.subr.mxu0 0.0
      %1229 = vmatpush1.xpose.msra.mxu0 0.0
      %1230 = vmatprep.subr.mxu0 0.0
      %1231 = vmatpush1.xpose.msra.mxu0 0.0
      %1232 = vmatprep.subr.mxu0 0.0
      %1233 = vmatpush1.xpose.msra.mxu0 0.0
      %1234 = vmatprep.subr.mxu0 0.0
      %1235 = vmatpush1.xpose.msra.mxu0 0.0
      %1236 = vmatprep.subr.mxu0 0.0
      %1237 = vmatpush1.xpose.msra.mxu0 0.0
      %1238 = vmatprep.subr.mxu0 0.0
      %1239 = vmatpush1.xpose.msra.mxu0 0.0
      %1240 = vmatprep.subr.mxu0 0.0
      %1241 = vmatpush1.xpose.msra.mxu0 0.0
      %1242 = vmatprep.subr.mxu0 0.0
      %1243 = vmatpush1.xpose.msra.mxu0 0.0
      %1244 = vmatprep.subr.mxu0 0.0
      %1245 = vmatpush1.xpose.msra.mxu0 0.0
      %1246 = vmatprep.subr.mxu0 0.0
      %1247 = vmatpush1.xpose.msra.mxu0 0.0
      %1248 = vmatprep.subr.mxu0 0.0
      %1249 = vmatpush1.xpose.msra.mxu0 0.0
      %1250 = vmatprep.mubr.f32.mxu0 0.0
      %1251 = vmatmul.mubr.f32.gmra.mrb[0].mxu0 %v1184
      %v1252 = vpop.f32.mrb[0].mxu0
      %v1253 = vadd.f32 0.0, %v1252
      %v1254 = vpop.f32.mrb[0].mxu0
      %1255 = vdwg.mxu0
      %v1256 = vsel %vm737, %v1253, -inf
      %1257 = vmax.xlane.f32.xlu0 %v1256
      %v1258 = vpop.xlane.xlu0 %1257
      %v1259 = vsub.f32 %v1253, %v1258
      %v1260 = vmul.f32 %v1259, 1.442695
      %v1261 = vpow.pop %v1260
      %v1262 = vsel %vm737, %v1261, 0.0
      %1263 = vadd.xlane.f32.xlu0 %v1262
      %v1264 = vpop.xlane.xlu0 %1263
      %v1265 = vrcp.pop %v1264
      %v1266 = vmul.f32 %v1261, %v1265
      %1268 = vrot.lane.b32.xlu0 %v1181, 64
      %v1269 = vpop.permute.xlu0 %1268
      %v1271 = vmul.f32 %v649, %v1269
      %1273 = vrot.lane.b32.xlu0 %v1271, 64
      %v1274 = vpop.permute.xlu0 %1273
      %v1277 = vsel %vm853, %v1266, 0
      %1279 = vmatprep.subr.mxu0 0.0
      %1280 = vmatpush1.msra.mxu0 %v1274
      %1281 = vmatprep.subr.mxu0 0.0
      %1282 = vmatpush1.msra.mxu0 0.0
      %1283 = vmatprep.subr.mxu0 0.0
      %1284 = vmatpush1.msra.mxu0 0.0
      %1285 = vmatprep.subr.mxu0 0.0
      %1286 = vmatpush1.msra.mxu0 0.0
      %1287 = vmatprep.subr.mxu0 0.0
      %1288 = vmatpush1.msra.mxu0 0.0
      %1289 = vmatprep.subr.mxu0 0.0
      %1290 = vmatpush1.msra.mxu0 0.0
      %1291 = vmatprep.subr.mxu0 0.0
      %1292 = vmatpush1.msra.mxu0 0.0
      %1293 = vmatprep.subr.mxu0 0.0
      %1294 = vmatpush1.msra.mxu0 0.0
      %1295 = vmatprep.subr.mxu0 0.0
      %1296 = vmatpush1.msra.mxu0 0.0
      %1297 = vmatprep.subr.mxu0 0.0
      %1298 = vmatpush1.msra.mxu0 0.0
      %1299 = vmatprep.subr.mxu0 0.0
      %1300 = vmatpush1.msra.mxu0 0.0
      %1301 = vmatprep.subr.mxu0 0.0
      %1302 = vmatpush1.msra.mxu0 0.0
      %1303 = vmatprep.subr.mxu0 0.0
      %1304 = vmatpush1.msra.mxu0 0.0
      %1305 = vmatprep.subr.mxu0 0.0
      %1306 = vmatpush1.msra.mxu0 0.0
      %1307 = vmatprep.subr.mxu0 0.0
      %1308 = vmatpush1.msra.mxu0 0.0
      %1309 = vmatprep.subr.mxu0 0.0
      %1310 = vmatpush1.msra.mxu0 0.0
      %1311 = vmatprep.subr.mxu0 0.0
      %1312 = vmatpush1.msra.mxu0 0.0
      %1313 = vmatprep.subr.mxu0 0.0
      %1314 = vmatpush1.msra.mxu0 0.0
      %1315 = vmatprep.subr.mxu0 0.0
      %1316 = vmatpush1.msra.mxu0 0.0
      %1317 = vmatprep.subr.mxu0 0.0
      %1318 = vmatpush1.msra.mxu0 0.0
      %1319 = vmatprep.subr.mxu0 0.0
      %1320 = vmatpush1.msra.mxu0 0.0
      %1321 = vmatprep.subr.mxu0 0.0
      %1322 = vmatpush1.msra.mxu0 0.0
      %1323 = vmatprep.subr.mxu0 0.0
      %1324 = vmatpush1.msra.mxu0 0.0
      %1325 = vmatprep.subr.mxu0 0.0
      %1326 = vmatpush1.msra.mxu0 0.0
      %1327 = vmatprep.subr.mxu0 0.0
      %1328 = vmatpush1.msra.mxu0 0.0
      %1329 = vmatprep.subr.mxu0 0.0
      %1330 = vmatpush1.msra.mxu0 0.0
      %1331 = vmatprep.subr.mxu0 0.0
      %1332 = vmatpush1.msra.mxu0 0.0
      %1333 = vmatprep.subr.mxu0 0.0
      %1334 = vmatpush1.msra.mxu0 0.0
      %1335 = vmatprep.subr.mxu0 0.0
      %1336 = vmatpush1.msra.mxu0 0.0
      %1337 = vmatprep.subr.mxu0 0.0
      %1338 = vmatpush1.msra.mxu0 0.0
      %1339 = vmatprep.subr.mxu0 0.0
      %1340 = vmatpush1.msra.mxu0 0.0
      %1341 = vmatprep.subr.mxu0 0.0
      %1342 = vmatpush1.msra.mxu0 0.0
      %1343 = vmatprep.mubr.f32.mxu0 0.0
      %1344 = vmatmul.mubr.f32.gmra.mrb[0].mxu0 %v1277
      %v1345 = vpop.f32.mrb[0].mxu0
      %v1346 = vadd.f32 0.0, %v1345
      %v1347 = vpop.f32.mrb[0].mxu0
      %1348 = vdwg.mxu0
      %v1349 = vadd.f32 %v1176, %v1346
      %v1350 = vld [vmem:[%s7] sm:$0xff]
      %v1351 = vld [vmem:[%s7 + $0x8] sm:$0xff]
      %v1352 = vld [vmem:[%s7 + $0x10] sm:$0xff]
      %v1353 = vld [vmem:[%s7 + $0x18] sm:$0xff]
      %v1354 = vld [vmem:[%s8] sm:$0x1]
      %v1356 = vsel %vm537, %v1349, 0
      %1358 = vmatprep.subr.mxu0 0.0
      %1359 = vmatpush1.msra.mxu0 %v1350
      %1360 = vmatprep.subr.mxu0 0.0
      %1361 = vmatpush1.msra.mxu0 %v1351
      %1362 = vmatprep.subr.mxu0 0.0
      %1363 = vmatpush1.msra.mxu0 %v1352
      %1364 = vmatprep.subr.mxu0 0.0
      %1365 = vmatpush1.msra.mxu0 %v1353
      %1366 = vmatprep.subr.mxu0 0.0
      %1367 = vmatpush1.msra.mxu0 0.0
      %1368 = vmatprep.subr.mxu0 0.0
      %1369 = vmatpush1.msra.mxu0 0.0
      %1370 = vmatprep.subr.mxu0 0.0
      %1371 = vmatpush1.msra.mxu0 0.0
      %1372 = vmatprep.subr.mxu0 0.0
      %1373 = vmatpush1.msra.mxu0 0.0
      %1374 = vmatprep.subr.mxu0 0.0
      %1375 = vmatpush1.msra.mxu0 0.0
      %1376 = vmatprep.subr.mxu0 0.0
      %1377 = vmatpush1.msra.mxu0 0.0
      %1378 = vmatprep.subr.mxu0 0.0
      %1379 = vmatpush1.msra.mxu0 0.0
      %1380 = vmatprep.subr.mxu0 0.0
      %1381 = vmatpush1.msra.mxu0 0.0
      %1382 = vmatprep.subr.mxu0 0.0
      %1383 = vmatpush1.msra.mxu0 0.0
      %1384 = vmatprep.subr.mxu0 0.0
      %1385 = vmatpush1.msra.mxu0 0.0
      %1386 = vmatprep.subr.mxu0 0.0
      %1387 = vmatpush1.msra.mxu0 0.0
      %1388 = vmatprep.subr.mxu0 0.0
      %1389 = vmatpush1.msra.mxu0 0.0
      %1390 = vmatprep.subr.mxu0 0.0
      %1391 = vmatpush1.msra.mxu0 0.0
      %1392 = vmatprep.subr.mxu0 0.0
      %1393 = vmatpush1.msra.mxu0 0.0
      %1394 = vmatprep.subr.mxu0 0.0
      %1395 = vmatpush1.msra.mxu0 0.0
      %1396 = vmatprep.subr.mxu0 0.0
      %1397 = vmatpush1.msra.mxu0 0.0
      %1398 = vmatprep.subr.mxu0 0.0
      %1399 = vmatpush1.msra.mxu0 0.0
      %1400 = vmatprep.subr.mxu0 0.0
      %1401 = vmatpush1.msra.mxu0 0.0
      %1402 = vmatprep.subr.mxu0 0.0
      %1403 = vmatpush1.msra.mxu0 0.0
      %1404 = vmatprep.subr.mxu0 0.0
      %1405 = vmatpush1.msra.mxu0 0.0
      %1406 = vmatprep.subr.mxu0 0.0
      %1407 = vmatpush1.msra.mxu0 0.0
      %1408 = vmatprep.subr.mxu0 0.0
      %1409 = vmatpush1.msra.mxu0 0.0
      %1410 = vmatprep.subr.mxu0 0.0
      %1411 = vmatpush1.msra.mxu0 0.0
      %1412 = vmatprep.subr.mxu0 0.0
      %1413 = vmatpush1.msra.mxu0 0.0
      %1414 = vmatprep.subr.mxu0 0.0
      %1415 = vmatpush1.msra.mxu0 0.0
      %1416 = vmatprep.subr.mxu0 0.0
      %1417 = vmatpush1.msra.mxu0 0.0
      %1418 = vmatprep.subr.mxu0 0.0
      %1419 = vmatpush1.msra.mxu0 0.0
      %1420 = vmatprep.subr.mxu0 0.0
      %1421 = vmatpush1.msra.mxu0 0.0
      %1422 = vmatprep.mubr.f32.mxu0 0.0
      %1423 = vmatmul.mubr.f32.gmra.mrb[0].mxu0 %v1356
      %v1424 = vpop.f32.mrb[0].mxu0
      %v1425 = vadd.f32 %v1354, %v1424
      %v1426 = vpop.f32.mrb[0].mxu0
      %1427 = vdwg.mxu0
      %v1428 = vld [vmem:[%s9] sm:$0xff]
      %v1429 = vld [vmem:[%s9 + $0x8] sm:$0xff]
      %v1430 = vld [vmem:[%s9 + $0x10] sm:$0xff]
      %v1431 = vld [vmem:[%s9 + $0x18] sm:$0xff]
      %v1432 = vld [vmem:[%s10] sm:$0x1]
      %v1434 = vsel %vm537, %v1425, 0
      %1436 = vmatprep.subr.mxu0 0.0
      %1437 = vmatpush1.msra.mxu0 %v1428
      %1438 = vmatprep.subr.mxu0 0.0
      %1439 = vmatpush1.msra.mxu0 %v1429
      %1440 = vmatprep.subr.mxu0 0.0
      %1441 = vmatpush1.msra.mxu0 %v1430
      %1442 = vmatprep.subr.mxu0 0.0
      %1443 = vmatpush1.msra.mxu0 %v1431
      %1444 = vmatprep.subr.mxu0 0.0
      %1445 = vmatpush1.msra.mxu0 0.0
      %1446 = vmatprep.subr.mxu0 0.0
      %1447 = vmatpush1.msra.mxu0 0.0
      %1448 = vmatprep.subr.mxu0 0.0
      %1449 = vmatpush1.msra.mxu0 0.0
      %1450 = vmatprep.subr.mxu0 0.0
      %1451 = vmatpush1.msra.mxu0 0.0
      %1452 = vmatprep.subr.mxu0 0.0
      %1453 = vmatpush1.msra.mxu0 0.0
      %1454 = vmatprep.subr.mxu0 0.0
      %1455 = vmatpush1.msra.mxu0 0.0
      %1456 = vmatprep.subr.mxu0 0.0
      %1457 = vmatpush1.msra.mxu0 0.0
      %1458 = vmatprep.subr.mxu0 0.0
      %1459 = vmatpush1.msra.mxu0 0.0
      %1460 = vmatprep.subr.mxu0 0.0
      %1461 = vmatpush1.msra.mxu0 0.0
      %1462 = vmatprep.subr.mxu0 0.0
      %1463 = vmatpush1.msra.mxu0 0.0
      %1464 = vmatprep.subr.mxu0 0.0
      %1465 = vmatpush1.msra.mxu0 0.0
      %1466 = vmatprep.subr.mxu0 0.0
      %1467 = vmatpush1.msra.mxu0 0.0
      %1468 = vmatprep.subr.mxu0 0.0
      %1469 = vmatpush1.msra.mxu0 0.0
      %1470 = vmatprep.subr.mxu0 0.0
      %1471 = vmatpush1.msra.mxu0 0.0
      %1472 = vmatprep.subr.mxu0 0.0
      %1473 = vmatpush1.msra.mxu0 0.0
      %1474 = vmatprep.subr.mxu0 0.0
      %1475 = vmatpush1.msra.mxu0 0.0
      %1476 = vmatprep.subr.mxu0 0.0
      %1477 = vmatpush1.msra.mxu0 0.0
      %1478 = vmatprep.subr.mxu0 0.0
      %1479 = vmatpush1.msra.mxu0 0.0
      %1480 = vmatprep.subr.mxu0 0.0
      %1481 = vmatpush1.msra.mxu0 0.0
      %1482 = vmatprep.subr.mxu0 0.0
      %1483 = vmatpush1.msra.mxu0 0.0
      %1484 = vmatprep.subr.mxu0 0.0
      %1485 = vmatpush1.msra.mxu0 0.0
      %1486 = vmatprep.subr.mxu0 0.0
      %1487 = vmatpush1.msra.mxu0 0.0
      %1488 = vmatprep.subr.mxu0 0.0
      %1489 = vmatpush1.msra.mxu0 0.0
      %1490 = vmatprep.subr.mxu0 0.0
      %1491 = vmatpush1.msra.mxu0 0.0
      %1492 = vmatprep.subr.mxu0 0.0
      %1493 = vmatpush1.msra.mxu0 0.0
      %1494 = vmatprep.subr.mxu0 0.0
      %1495 = vmatpush1.msra.mxu0 0.0
      %1496 = vmatprep.subr.mxu0 0.0
      %1497 = vmatpush1.msra.mxu0 0.0
      %1498 = vmatprep.subr.mxu0 0.0
      %1499 = vmatpush1.msra.mxu0 0.0
      %1500 = vmatprep.mubr.f32.mxu0 0.0
      %1501 = vmatmul.mubr.f32.gmra.mrb[0].mxu0 %v1434
      %v1502 = vpop.f32.mrb[0].mxu0
      %v1503 = vadd.f32 %v1432, %v1502
      %v1504 = vpop.f32.mrb[0].mxu0
      %1505 = vdwg.mxu0
      %v1506 = vmul.f32 %v1503, 0.5
      %v1507 = vmul.f32 %v1503, %v1503
      %v1508 = vmul.f32 %v1507, %v1503
      %v1509 = vmul.f32 %v1508, 0.044715
      %v1510 = vadd.f32 %v1503, %v1509
      %v1511 = vmul.f32 %v1510, 0.7978846
      %v1512 = vtanh.pop %v1511
      %v1513 = vadd.f32 %v1512, 1.0
      %v1514 = vmul.f32 %v1506, %v1513
      %v1515 = vld [vmem:[%s11] sm:$0x1]
      %v1516 = vmul.f32 %v1514, %v1515
      %vm1517 = vcmask 516096
      %v1518 = vsel %vm1517, %v1516, 0.0
      %1519 = vadd.xlane.f32.xlu0 %v1518
      %v1520 = vpop.xlane.xlu0 %1519
      %v1521 = vld [vmem:[#allocation2] sm:$0x1]
      %v1522 = vadd.f32 %v1520, %v1521
      %v1523 = vsub.f32 0.0, %v1522
      %v1524 = vmul.f32 %v1523, 1.442695
      %v1525 = vpow.pop %v1524
      %v1526 = vadd.f32 %v1525, 1.0
      %v1527 = vrcp.pop %v1526
      %v1528 = vmul.f32 1.0, %v1527
      %vm1529 = vcmask 0
      %1530 = vst.msk [vmem:[%s435] sm:$0x1] %vm1529, %v1528
      %p1531 = scmp.lt.s32.totalorder %s26, 1
      %s1532 = scalar_select %p1531, %s26, 1
      %s1533 = scalar_lea.vmem %s13, %s1532
      // Predicated region
      $region73: #{tpu_custom_call.1} parent=71 // pred_check
        %p1534 = pneg %p322
      $region74: #{tpu_custom_call.1} parent=71 // pred_check_branch
        %1536 = sbr.rel (%p1534) target = $region76
      $region75: #{tpu_custom_call.1} parent=71 // pred_region
        _
      $region76: #{tpu_custom_call.1} parent=71 // pred_fallthru
        _
    $region72: #{tpu_custom_call.1} parent=5 // pred_fallthru
      _
    %p1537 = scmp.le.s32.totalorder 2, %s21
    // Predicated region
    $region77: #{tpu_custom_call.1} parent=5 // pred_check
      %p1538 = pneg %p1537
    $region78: #{tpu_custom_call.1} parent=5 // pred_check_branch
      %1540 = sbr.rel (%p1538) target = $region80
    $region79: #{tpu_custom_call.1} parent=5 // pred_region
      %s1541 = ssub.s32 %s21, 2
      // Predicated region
      $region81: #{tpu_custom_call.1} parent=79 // pred_check
        %p1542 = pneg %p328
      $region82: #{tpu_custom_call.1} parent=79 // pred_check_branch
        %1544 = sbr.rel (%p1542) target = $region84
      $region83: #{tpu_custom_call.1} parent=79 // pred_region
        %p1545 = scmp.lt.s32.totalorder %s27, 1
        %s1546 = scalar_select %p1545, %s27, 1
        %s1547 = scalar_lea.vmem %s13, %s1546
      $region84: #{tpu_custom_call.1} parent=79 // pred_fallthru
        _
    $region80: #{tpu_custom_call.1} parent=5 // pred_fallthru
      _
  $region6: #{tpu_custom_call.1} parent=0 // loop_footer
    %s25 = sadd.s32 1, %s21
  $region7: #{tpu_custom_call.1} parent=0 // loop_footer_branch
    %20 = sbr.rel target = $region3
  $region8: #{tpu_custom_call.1} parent=0 // loop_exit
    _

</llo_original>
